<compile_context>
chip_gen: v6e
topology: v6e:2x2x1
jax: 0.10.0
libtpu: 0.0.40
codegen_flags: <defaults>
</compile_context>

<pallas_src>
import functools

import jax
import jax.numpy as jnp
from jax.experimental import pallas as pl
from jax.experimental.pallas import tpu as pltpu

LANE = 128       # lane-dense padding target for hidden / output feature dims
MAX_TB = 2048    # max batch-tile rows; below this the grid collapses to 1 step


def mlp_kernel(x_ref, w1_ref, b1_ref, w2_ref, b2_ref, w3_ref, b3_ref, o_ref):
    """y = relu(relu(x@W1+b1)@W2+b2)@W3+b3, fused in one kernel.

    Matmul operands may be bf16 (single-pass vmatmul on v6e/v7x); accumulation
    and the bias+ReLU epilogue stay f32."""
    h1 = jnp.dot(x_ref[...], w1_ref[...], preferred_element_type=jnp.float32)
    h1 = jnp.maximum(h1 + b1_ref[...], 0.0)
    h2 = jnp.dot(h1.astype(w2_ref.dtype), w2_ref[...],
                 preferred_element_type=jnp.float32)
    h2 = jnp.maximum(h2 + b2_ref[...], 0.0)
    out = jnp.dot(h2.astype(w3_ref.dtype), w3_ref[...],
                  preferred_element_type=jnp.float32)
    o_ref[...] = (out + b3_ref[...]).astype(o_ref.dtype)


def _pad_to(a, rows, cols):
    """Zero-pad a 2-D array up to (rows, cols)."""
    return jnp.pad(a, ((0, rows - a.shape[0]), (0, cols - a.shape[1])))


def prepare_params(w1, b1, w2, b2, w3, b3, *, matmul_dtype=jnp.bfloat16):
    """Pad params to 128-lane feature dims ONCE (hoisted out of the per-call
    path) and cast matmul operands to `matmul_dtype`.  Biases stay f32 (the
    epilogue runs in f32).  Zero padding keeps padded hidden/output lanes
    exactly 0 through the ReLUs, so the math is unchanged."""
    n_in = w1.shape[0]
    w1p = _pad_to(w1, n_in, LANE).astype(matmul_dtype)
    b1p = _pad_to(b1, 1, LANE).astype(jnp.float32)
    w2p = _pad_to(w2, LANE, LANE).astype(matmul_dtype)
    b2p = _pad_to(b2, 1, LANE).astype(jnp.float32)
    w3p = _pad_to(w3, LANE, LANE).astype(matmul_dtype)
    b3p = _pad_to(b3, 1, LANE).astype(jnp.float32)
    return (w1p, b1p, w2p, b2p, w3p, b3p)


def _vmem_limit_bytes(tb, n_in, x_itemsize, w_itemsize):
    """VMEM budget from real block sizes (+ headroom); portable across
    v5e/v6e (128 MiB physical) and v7x (64 MiB)."""
    bytes_x = tb * n_in * x_itemsize
    bytes_out = tb * LANE * 4
    bytes_w = w_itemsize * (n_in * LANE + 2 * LANE * LANE) + 4 * 3 * LANE
    # streamed blocks are double-buffered; weights resident; + 4 MiB headroom
    return 2 * (bytes_x + bytes_out) + 2 * bytes_w + (4 << 20)


@functools.partial(jax.jit, static_argnames=("n_out", "max_tb"))
def net_forward(x, params, *, n_out, max_tb=MAX_TB):
    """Forward pass.  x: (B, n_in) f32; params from prepare_params().
    Returns (B, n_out) f32."""
    w1p, b1p, w2p, b2p, w3p, b3p = params
    B, n_in = x.shape

    # Batch tiling: one grid step whenever B fits in a single tile (grid-step
    # overhead dominates this tiny kernel); otherwise tile at max_tb rows.
    B8 = pl.cdiv(B, 8) * 8                       # sublane alignment
    if B8 <= max_tb:
        tb = B8
        B_pad = B8
    else:
        tb = max_tb
        B_pad = pl.cdiv(B, tb) * tb

    x_p = jnp.pad(x, ((0, B_pad - B), (0, 0))).astype(w1p.dtype)

    resident = lambda a: pl.BlockSpec(a.shape, lambda i: (0, 0))  # stays in VMEM

    out_padded = pl.pallas_call(
        mlp_kernel,
        out_shape=jax.ShapeDtypeStruct((B_pad, LANE), jnp.float32),
        grid=(B_pad // tb,),
        in_specs=[
            pl.BlockSpec((tb, n_in), lambda i: (i, 0)),   # x: streamed batch tile
            resident(w1p), resident(b1p),
            resident(w2p), resident(b2p),
            resident(w3p), resident(b3p),
        ],
        out_specs=pl.BlockSpec((tb, LANE), lambda i: (i, 0)),    # lane-dense store
        compiler_params=pltpu.CompilerParams(
            dimension_semantics=("parallel",),    # shards batch tiles across TCs (v7x)
            vmem_limit_bytes=_vmem_limit_bytes(
                tb, n_in, x_p.dtype.itemsize, w1p.dtype.itemsize),
        ),
    )(x_p, w1p, b1p, w2p, b2p, w3p, b3p)

    # Strip batch padding and the padded output lanes in the (jitted) wrapper.
    return out_padded[:B, :n_out]


def init_linear(key, n_in, n_out):
    """Deterministic init mimicking PyTorch nn.Linear default (U(+/-1/sqrt(fan_in))).
    Stored as (in, out) so forward is x @ W + b."""
    k_w, k_b = jax.random.split(key)
    bound = 1.0 / jnp.sqrt(jnp.float32(n_in))
    w = jax.random.uniform(k_w, (n_in, n_out), jnp.float32, -bound, bound)
    b = jax.random.uniform(k_b, (1, n_out), jnp.float32, -bound, bound)
    return w, b


if __name__ == "__main__":
    # DQN-style MLP: n_in=4, n_mid=32, n_out=2.
    B, n_in, n_mid, n_out = 512, 4, 32, 2

    key = jax.random.PRNGKey(0)
    kx, k1, k2, k3 = jax.random.split(key, 4)

    x = jax.random.normal(kx, (B, n_in), jnp.float32)
    w1, b1 = init_linear(k1, n_in, n_mid)
    w2, b2 = init_linear(k2, n_mid, n_mid)
    w3, b3 = init_linear(k3, n_mid, n_out)

    # Pure-JAX f32 reference of the same forward pass (unpadded weights).
    h1 = jnp.maximum(x @ w1 + b1, 0.0)
    h2 = jnp.maximum(h1 @ w2 + b2, 0.0)
    ref = h2 @ w3 + b3

    # 1) Exact-math check: f32 matmul operands, tight tolerance.
    params_f32 = prepare_params(w1, b1, w2, b2, w3, b3, matmul_dtype=jnp.float32)
    out_f32 = jax.block_until_ready(net_forward(x, params_f32, n_out=n_out))
    assert out_f32.shape == (B, n_out)
    assert jnp.allclose(out_f32, ref, atol=1e-5, rtol=1e-5)

    # 2) Fast path: bf16 MXU operands (single-pass vmatmul on v6e/v7x), f32 epilogue.
    params = prepare_params(w1, b1, w2, b2, w3, b3)  # padded + cast once at init
    out = jax.block_until_ready(net_forward(x, params, n_out=n_out))
    assert out.shape == (B, n_out)
    assert jnp.allclose(out, ref, atol=2e-2, rtol=2e-2)

    # 3) Small-batch per-step inference path: dedicated tb=8 tile (no padding to 128 rows).
    out_small = jax.block_until_ready(net_forward(x[:8], params, n_out=n_out))
    assert jnp.allclose(out_small, ref[:8], atol=2e-2, rtol=2e-2)

    print("KERNEL_OK")
</pallas_src>

<mosaic_0001>
module attributes {stable_mosaic.version = 11 : i64} {
  func.func @mlp_kernel(%arg0: i32, %arg1: memref<512x4xf32, #tpu.memory_space<vmem>>, %arg2: memref<4x128xf32, #tpu.memory_space<vmem>>, %arg3: memref<1x128xf32, #tpu.memory_space<vmem>>, %arg4: memref<128x128xf32, #tpu.memory_space<vmem>>, %arg5: memref<1x128xf32, #tpu.memory_space<vmem>>, %arg6: memref<128x128xf32, #tpu.memory_space<vmem>>, %arg7: memref<1x128xf32, #tpu.memory_space<vmem>>, %arg8: memref<512x128xf32, #tpu.memory_space<vmem>>) attributes {dimension_semantics = [#tpu.dimension_semantics<parallel>], iteration_bounds = array<i64: 1>, scalar_prefetch = 0 : i64, scratch_operands = 0 : i64, tpu.core_type = #tpu.core_type<tc>, window_params = [{transform_indices = @transform_0, window_bounds = array<i64: 512, 4>}, {pipeline_mode = #tpu.pipeline_mode<synchronous>, transform_indices = @transform_1, window_bounds = array<i64: 4, 128>}, {pipeline_mode = #tpu.pipeline_mode<synchronous>, transform_indices = @transform_2, window_bounds = array<i64: 1, 128>}, {pipeline_mode = #tpu.pipeline_mode<synchronous>, transform_indices = @transform_3, window_bounds = array<i64: 128, 128>}, {pipeline_mode = #tpu.pipeline_mode<synchronous>, transform_indices = @transform_4, window_bounds = array<i64: 1, 128>}, {pipeline_mode = #tpu.pipeline_mode<synchronous>, transform_indices = @transform_5, window_bounds = array<i64: 128, 128>}, {pipeline_mode = #tpu.pipeline_mode<synchronous>, transform_indices = @transform_6, window_bounds = array<i64: 1, 128>}, {transform_indices = @transform_7, window_bounds = array<i64: 512, 128>}]} {
    %c0 = arith.constant 0 : index
    %c0_0 = arith.constant 0 : index
    %0 = vector.load %arg1[%c0, %c0_0] : memref<512x4xf32, #tpu.memory_space<vmem>>, vector<512x4xf32>
    %c0_1 = arith.constant 0 : index
    %c0_2 = arith.constant 0 : index
    %1 = vector.load %arg2[%c0_1, %c0_2] : memref<4x128xf32, #tpu.memory_space<vmem>>, vector<4x128xf32>
    %cst = arith.constant dense<0.000000e+00> : vector<512x128xf32>
    %2 = tpu.matmul %0, %1, %cst {dimension_numbers = #tpu.dot_dimension_numbers<[1], [0], [0], [1], [0, 0, 1, 1], [], []>} : vector<512x4xf32>, vector<4x128xf32>, vector<512x128xf32> -> vector<512x128xf32>
    %c0_3 = arith.constant 0 : index
    %c0_4 = arith.constant 0 : index
    %3 = vector.load %arg3[%c0_3, %c0_4] : memref<1x128xf32, #tpu.memory_space<vmem>>, vector<1x128xf32>
    %4 = vector.broadcast %3 : vector<1x128xf32> to vector<512x128xf32>
    %5 = arith.addf %2, %4 : vector<512x128xf32>
    %cst_5 = arith.constant 0.000000e+00 : f32
    %6 = vector.broadcast %cst_5 : f32 to vector<512x128xf32>
    %7 = arith.maximumf %5, %6 : vector<512x128xf32>
    %c0_6 = arith.constant 0 : index
    %c0_7 = arith.constant 0 : index
    %8 = vector.load %arg4[%c0_6, %c0_7] : memref<128x128xf32, #tpu.memory_space<vmem>>, vector<128x128xf32>
    %cst_8 = arith.constant dense<0.000000e+00> : vector<512x128xf32>
    %9 = tpu.matmul %7, %8, %cst_8 {dimension_numbers = #tpu.dot_dimension_numbers<[1], [0], [0], [1], [0, 0, 1, 1], [], []>} : vector<512x128xf32>, vector<128x128xf32>, vector<512x128xf32> -> vector<512x128xf32>
    %c0_9 = arith.constant 0 : index
    %c0_10 = arith.constant 0 : index
    %10 = vector.load %arg5[%c0_9, %c0_10] : memref<1x128xf32, #tpu.memory_space<vmem>>, vector<1x128xf32>
    %11 = vector.broadcast %10 : vector<1x128xf32> to vector<512x128xf32>
    %12 = arith.addf %9, %11 : vector<512x128xf32>
    %cst_11 = arith.constant 0.000000e+00 : f32
    %13 = vector.broadcast %cst_11 : f32 to vector<512x128xf32>
    %14 = arith.maximumf %12, %13 : vector<512x128xf32>
    %c0_12 = arith.constant 0 : index
    %c0_13 = arith.constant 0 : index
    %15 = vector.load %arg6[%c0_12, %c0_13] : memref<128x128xf32, #tpu.memory_space<vmem>>, vector<128x128xf32>
    %cst_14 = arith.constant dense<0.000000e+00> : vector<512x128xf32>
    %16 = tpu.matmul %14, %15, %cst_14 {dimension_numbers = #tpu.dot_dimension_numbers<[1], [0], [0], [1], [0, 0, 1, 1], [], []>} : vector<512x128xf32>, vector<128x128xf32>, vector<512x128xf32> -> vector<512x128xf32>
    %c0_15 = arith.constant 0 : index
    %c0_16 = arith.constant 0 : index
    %17 = vector.load %arg7[%c0_15, %c0_16] : memref<1x128xf32, #tpu.memory_space<vmem>>, vector<1x128xf32>
    %18 = vector.broadcast %17 : vector<1x128xf32> to vector<512x128xf32>
    %19 = arith.addf %16, %18 : vector<512x128xf32>
    %c0_17 = arith.constant 0 : index
    %c0_18 = arith.constant 0 : index
    %20 = vector.load %arg8[%c0_17, %c0_18] : memref<512x128xf32, #tpu.memory_space<vmem>>, vector<512x128xf32>
    tpu.vector_store %arg8[%c0_17, %c0_18], %19 {strides = array<i32>} : memref<512x128xf32, #tpu.memory_space<vmem>>, vector<512x128xf32>,
    return
  }
  func.func @transform_0(%arg0: i32) -> (i32, i32) {
    %c0_i32 = arith.constant 0 : i32
    %c0_i32_0 = arith.constant 0 : i32
    return %arg0, %c0_i32 : i32, i32
  }
  func.func @transform_1(%arg0: i32) -> (i32, i32) {
    %c0_i32 = arith.constant 0 : i32
    %c0_i32_0 = arith.constant 0 : i32
    %c0_i32_1 = arith.constant 0 : i32
    return %c0_i32, %c0_i32_0 : i32, i32
  }
  func.func @transform_2(%arg0: i32) -> (i32, i32) {
    %c0_i32 = arith.constant 0 : i32
    %c0_i32_0 = arith.constant 0 : i32
    %c0_i32_1 = arith.constant 0 : i32
    return %c0_i32, %c0_i32_0 : i32, i32
  }
  func.func @transform_3(%arg0: i32) -> (i32, i32) {
    %c0_i32 = arith.constant 0 : i32
    %c0_i32_0 = arith.constant 0 : i32
    %c0_i32_1 = arith.constant 0 : i32
    return %c0_i32, %c0_i32_0 : i32, i32
  }
  func.func @transform_4(%arg0: i32) -> (i32, i32) {
    %c0_i32 = arith.constant 0 : i32
    %c0_i32_0 = arith.constant 0 : i32
    %c0_i32_1 = arith.constant 0 : i32
    return %c0_i32, %c0_i32_0 : i32, i32
  }
  func.func @transform_5(%arg0: i32) -> (i32, i32) {
    %c0_i32 = arith.constant 0 : i32
    %c0_i32_0 = arith.constant 0 : i32
    %c0_i32_1 = arith.constant 0 : i32
    return %c0_i32, %c0_i32_0 : i32, i32
  }
  func.func @transform_6(%arg0: i32) -> (i32, i32) {
    %c0_i32 = arith.constant 0 : i32
    %c0_i32_0 = arith.constant 0 : i32
    %c0_i32_1 = arith.constant 0 : i32
    return %c0_i32, %c0_i32_0 : i32, i32
  }
  func.func @transform_7(%arg0: i32) -> (i32, i32) {
    %c0_i32 = arith.constant 0 : i32
    %c0_i32_0 = arith.constant 0 : i32
    return %arg0, %c0_i32 : i32, i32
  }
}

</mosaic_0001>

<llo_original>
// kernel: net_forward.1
$region0: #{net_forward.1}
  #allocation0 [shape = 'u32[]', space=smem, size = 0x4, offset = 0x4, fixed_abs, tag = 'smem constant byte address 0x4 - core index']
  #allocation1 [shape = 'u32[144,128]{1,0:T(1,128)}', space=vmem, size = 0x12000, scoped, tag = 'internal scratch']
  %s0 = inlined_call_operand.vmem [shape: f32[512,4], index: 0, kind: input, shape index: {}]
  %s1 = inlined_call_operand.vmem [shape: f32[4,128], index: 1, kind: input, shape index: {}]
  %s2 = inlined_call_operand.vmem [shape: f32[1,128], index: 2, kind: input, shape index: {}]
  %s3 = inlined_call_operand.vmem [shape: f32[128,128], index: 3, kind: input, shape index: {}]
  %s4 = inlined_call_operand.vmem [shape: f32[1,128], index: 4, kind: input, shape index: {}]
  %s5 = inlined_call_operand.vmem [shape: f32[128,128], index: 5, kind: input, shape index: {}]
  %s6 = inlined_call_operand.vmem [shape: f32[1,128], index: 6, kind: input, shape index: {}]
  %s7 = inlined_call_operand.vmem [shape: f32[512,128], index: 7, kind: output, shape index: {}]
  %s8 = sld [smem:[#allocation0]]
  $region38: #{net_forward.1} parent=0
    _
  %s10 = ssub.s32 1, %s8
  %s11 = scalar_select 0, %s10, %s8
  // Predicated region
  $region2: #{net_forward.1} parent=0 // pred_check
    _
  $region3: #{net_forward.1} parent=0 // pred_check_branch
    %13 = sbr.rel (0) target = $region5
  $region4: #{net_forward.1} parent=0 // pred_region
    _
  $region5: #{net_forward.1} parent=0 // pred_fallthru
    _
  // Predicated region
  $region6: #{net_forward.1} parent=0 // pred_check
    _
  $region7: #{net_forward.1} parent=0 // pred_check_branch
    %15 = sbr.rel (0) target = $region9
  $region8: #{net_forward.1} parent=0 // pred_region
    _
  $region9: #{net_forward.1} parent=0 // pred_fallthru
    _
  // Predicated region
  $region10: #{net_forward.1} parent=0 // pred_check
    _
  $region11: #{net_forward.1} parent=0 // pred_check_branch
    %17 = sbr.rel (0) target = $region13
  $region12: #{net_forward.1} parent=0 // pred_region
    _
  $region13: #{net_forward.1} parent=0 // pred_fallthru
    _
  // Predicated region
  $region14: #{net_forward.1} parent=0 // pred_check
    _
  $region15: #{net_forward.1} parent=0 // pred_check_branch
    %19 = sbr.rel (0) target = $region17
  $region16: #{net_forward.1} parent=0 // pred_region
    _
  $region17: #{net_forward.1} parent=0 // pred_fallthru
    _
  // Predicated region
  $region18: #{net_forward.1} parent=0 // pred_check
    _
  $region19: #{net_forward.1} parent=0 // pred_check_branch
    %21 = sbr.rel (0) target = $region21
  $region20: #{net_forward.1} parent=0 // pred_region
    _
  $region21: #{net_forward.1} parent=0 // pred_fallthru
    _
  // Predicated region
  $region22: #{net_forward.1} parent=0 // pred_check
    _
  $region23: #{net_forward.1} parent=0 // pred_check_branch
    %23 = sbr.rel (0) target = $region25
  $region24: #{net_forward.1} parent=0 // pred_region
    _
  $region25: #{net_forward.1} parent=0 // pred_fallthru
    _
  // Predicated region
  $region26: #{net_forward.1} parent=0 // pred_check
    _
  $region27: #{net_forward.1} parent=0 // pred_check_branch
    %25 = sbr.rel (0) target = $region29
  $region28: #{net_forward.1} parent=0 // pred_region
    _
  $region29: #{net_forward.1} parent=0 // pred_fallthru
    _
  %v26 = vld [vmem:[%s0] sm:$0xff]
  %v27 = vld [vmem:[%s0 + $0x8] sm:$0xff]
  %v28 = vld [vmem:[%s0 + $0x10] sm:$0xff]
  %v29 = vld [vmem:[%s0 + $0x18] sm:$0xff]
  %v30 = vld [vmem:[%s0 + $0x20] sm:$0xff]
  %v31 = vld [vmem:[%s0 + $0x28] sm:$0xff]
  %v32 = vld [vmem:[%s0 + $0x30] sm:$0xff]
  %v33 = vld [vmem:[%s0 + $0x38] sm:$0xff]
  %v34 = vld [vmem:[%s0 + $0x40] sm:$0xff]
  %v35 = vld [vmem:[%s0 + $0x48] sm:$0xff]
  %v36 = vld [vmem:[%s0 + $0x50] sm:$0xff]
  %v37 = vld [vmem:[%s0 + $0x58] sm:$0xff]
  %v38 = vld [vmem:[%s0 + $0x60] sm:$0xff]
  %v39 = vld [vmem:[%s0 + $0x68] sm:$0xff]
  %v40 = vld [vmem:[%s0 + $0x70] sm:$0xff]
  %v41 = vld [vmem:[%s0 + $0x78] sm:$0xff]
  %v42 = vld [vmem:[%s0 + $0x80] sm:$0xff]
  %v43 = vld [vmem:[%s0 + $0x88] sm:$0xff]
  %v44 = vld [vmem:[%s0 + $0x90] sm:$0xff]
  %v45 = vld [vmem:[%s0 + $0x98] sm:$0xff]
  %v46 = vld [vmem:[%s0 + $0xa0] sm:$0xff]
  %v47 = vld [vmem:[%s0 + $0xa8] sm:$0xff]
  %v48 = vld [vmem:[%s0 + $0xb0] sm:$0xff]
  %v49 = vld [vmem:[%s0 + $0xb8] sm:$0xff]
  %v50 = vld [vmem:[%s0 + $0xc0] sm:$0xff]
  %v51 = vld [vmem:[%s0 + $0xc8] sm:$0xff]
  %v52 = vld [vmem:[%s0 + $0xd0] sm:$0xff]
  %v53 = vld [vmem:[%s0 + $0xd8] sm:$0xff]
  %v54 = vld [vmem:[%s0 + $0xe0] sm:$0xff]
  %v55 = vld [vmem:[%s0 + $0xe8] sm:$0xff]
  %v56 = vld [vmem:[%s0 + $0xf0] sm:$0xff]
  %v57 = vld [vmem:[%s0 + $0xf8] sm:$0xff]
  %v58 = vld [vmem:[%s0 + $0x100] sm:$0xff]
  %v59 = vld [vmem:[%s0 + $0x108] sm:$0xff]
  %v60 = vld [vmem:[%s0 + $0x110] sm:$0xff]
  %v61 = vld [vmem:[%s0 + $0x118] sm:$0xff]
  %v62 = vld [vmem:[%s0 + $0x120] sm:$0xff]
  %v63 = vld [vmem:[%s0 + $0x128] sm:$0xff]
  %v64 = vld [vmem:[%s0 + $0x130] sm:$0xff]
  %v65 = vld [vmem:[%s0 + $0x138] sm:$0xff]
  %v66 = vld [vmem:[%s0 + $0x140] sm:$0xff]
  %v67 = vld [vmem:[%s0 + $0x148] sm:$0xff]
  %v68 = vld [vmem:[%s0 + $0x150] sm:$0xff]
  %v69 = vld [vmem:[%s0 + $0x158] sm:$0xff]
  %v70 = vld [vmem:[%s0 + $0x160] sm:$0xff]
  %v71 = vld [vmem:[%s0 + $0x168] sm:$0xff]
  %v72 = vld [vmem:[%s0 + $0x170] sm:$0xff]
  %v73 = vld [vmem:[%s0 + $0x178] sm:$0xff]
  %v74 = vld [vmem:[%s0 + $0x180] sm:$0xff]
  %v75 = vld [vmem:[%s0 + $0x188] sm:$0xff]
  %v76 = vld [vmem:[%s0 + $0x190] sm:$0xff]
  %v77 = vld [vmem:[%s0 + $0x198] sm:$0xff]
  %v78 = vld [vmem:[%s0 + $0x1a0] sm:$0xff]
  %v79 = vld [vmem:[%s0 + $0x1a8] sm:$0xff]
  %v80 = vld [vmem:[%s0 + $0x1b0] sm:$0xff]
  %v81 = vld [vmem:[%s0 + $0x1b8] sm:$0xff]
  %v82 = vld [vmem:[%s0 + $0x1c0] sm:$0xff]
  %v83 = vld [vmem:[%s0 + $0x1c8] sm:$0xff]
  %v84 = vld [vmem:[%s0 + $0x1d0] sm:$0xff]
  %v85 = vld [vmem:[%s0 + $0x1d8] sm:$0xff]
  %v86 = vld [vmem:[%s0 + $0x1e0] sm:$0xff]
  %v87 = vld [vmem:[%s0 + $0x1e8] sm:$0xff]
  %v88 = vld [vmem:[%s0 + $0x1f0] sm:$0xff]
  %v89 = vld [vmem:[%s0 + $0x1f8] sm:$0xff]
  %v90 = vld [vmem:[%s1] sm:$0xf]
  %v91 = vld [vmem:[%s2] sm:$0x1]
  %v93 = vlaneseq
  %v94 = vshrl.u32 %v93, 7
  %v95 = vsub.s32 0, %v94
  %v96 = vrot.slane %v91, %v95
  %vm98 = vcmask 31744
  %v100 = vsel %vm98, %v26, 0
  %v103 = vsel %vm98, %v27, 0
  %v106 = vsel %vm98, %v28, 0
  %v109 = vsel %vm98, %v29, 0
  %v112 = vsel %vm98, %v30, 0
  %v115 = vsel %vm98, %v31, 0
  %v118 = vsel %vm98, %v32, 0
  %v121 = vsel %vm98, %v33, 0
  %v124 = vsel %vm98, %v34, 0
  %v127 = vsel %vm98, %v35, 0
  %v130 = vsel %vm98, %v36, 0
  %v133 = vsel %vm98, %v37, 0
  %v136 = vsel %vm98, %v38, 0
  %v139 = vsel %vm98, %v39, 0
  %v142 = vsel %vm98, %v40, 0
  %v145 = vsel %vm98, %v41, 0
  %v148 = vsel %vm98, %v42, 0
  %v151 = vsel %vm98, %v43, 0
  %v154 = vsel %vm98, %v44, 0
  %v157 = vsel %vm98, %v45, 0
  %v160 = vsel %vm98, %v46, 0
  %v163 = vsel %vm98, %v47, 0
  %v166 = vsel %vm98, %v48, 0
  %v169 = vsel %vm98, %v49, 0
  %v172 = vsel %vm98, %v50, 0
  %v175 = vsel %vm98, %v51, 0
  %v178 = vsel %vm98, %v52, 0
  %v181 = vsel %vm98, %v53, 0
  %v184 = vsel %vm98, %v54, 0
  %v187 = vsel %vm98, %v55, 0
  %v190 = vsel %vm98, %v56, 0
  %v193 = vsel %vm98, %v57, 0
  %v196 = vsel %vm98, %v58, 0
  %v199 = vsel %vm98, %v59, 0
  %v202 = vsel %vm98, %v60, 0
  %v205 = vsel %vm98, %v61, 0
  %v208 = vsel %vm98, %v62, 0
  %v211 = vsel %vm98, %v63, 0
  %v214 = vsel %vm98, %v64, 0
  %v217 = vsel %vm98, %v65, 0
  %v220 = vsel %vm98, %v66, 0
  %v223 = vsel %vm98, %v67, 0
  %v226 = vsel %vm98, %v68, 0
  %v229 = vsel %vm98, %v69, 0
  %v232 = vsel %vm98, %v70, 0
  %v235 = vsel %vm98, %v71, 0
  %v238 = vsel %vm98, %v72, 0
  %v241 = vsel %vm98, %v73, 0
  %v244 = vsel %vm98, %v74, 0
  %v247 = vsel %vm98, %v75, 0
  %v250 = vsel %vm98, %v76, 0
  %v253 = vsel %vm98, %v77, 0
  %v256 = vsel %vm98, %v78, 0
  %v259 = vsel %vm98, %v79, 0
  %v262 = vsel %vm98, %v80, 0
  %v265 = vsel %vm98, %v81, 0
  %v268 = vsel %vm98, %v82, 0
  %v271 = vsel %vm98, %v83, 0
  %v274 = vsel %vm98, %v84, 0
  %v277 = vsel %vm98, %v85, 0
  %v280 = vsel %vm98, %v86, 0
  %v283 = vsel %vm98, %v87, 0
  %v286 = vsel %vm98, %v88, 0
  %v289 = vsel %vm98, %v89, 0
  %vm291 = vcmask 1043456
  %v293 = vsel %vm291, %v90, 0
  %295 = vmatprep.subr.mxu0 0.0
  %296 = vmatpush1.msra.mxu0 0.0
  %297 = vmatprep.subr.mxu0 0.0
  %298 = vmatpush1.msra.mxu0 0.0
  %299 = vmatprep.subr.mxu0 0.0
  %300 = vmatpush1.msra.mxu0 0.0
  %301 = vmatprep.subr.mxu0 0.0
  %302 = vmatpush1.msra.mxu0 0.0
  %303 = vmatprep.subr.mxu0 0.0
  %304 = vmatpush1.msra.mxu0 0.0
  %305 = vmatprep.subr.mxu0 0.0
  %306 = vmatpush1.msra.mxu0 0.0
  %307 = vmatprep.subr.mxu0 0.0
  %308 = vmatpush1.msra.mxu0 0.0
  %309 = vmatprep.subr.mxu0 0.0
  %310 = vmatpush1.msra.mxu0 0.0
  %311 = vmatprep.subr.mxu0 0.0
  %312 = vmatpush1.msra.mxu0 0.0
  %313 = vmatprep.subr.mxu0 0.0
  %314 = vmatpush1.msra.mxu0 0.0
  %315 = vmatprep.subr.mxu0 0.0
  %316 = vmatpush1.msra.mxu0 0.0
  %317 = vmatprep.subr.mxu0 0.0
  %318 = vmatpush1.msra.mxu0 0.0
  %319 = vmatprep.subr.mxu0 0.0
  %320 = vmatpush1.msra.mxu0 0.0
  %321 = vmatprep.subr.mxu0 0.0
  %322 = vmatpush1.msra.mxu0 0.0
  %323 = vmatprep.subr.mxu0 0.0
  %324 = vmatpush1.msra.mxu0 0.0
  %325 = vmatprep.subr.mxu0 0.0
  %326 = vmatpush1.msra.mxu0 %v293
  %327 = vmatprep.subr.mxu0 0.0
  %328 = vmatpush2.msra.mxu0 0.0
  %329 = vmatprep.subr.mxu0 0.0
  %330 = vmatpush2.msra.mxu0 0.0
  %331 = vmatprep.subr.mxu0 0.0
  %332 = vmatpush2.msra.mxu0 0.0
  %333 = vmatprep.subr.mxu0 0.0
  %334 = vmatpush2.msra.mxu0 0.0
  %335 = vmatprep.subr.mxu0 0.0
  %336 = vmatpush2.msra.mxu0 0.0
  %337 = vmatprep.subr.mxu0 0.0
  %338 = vmatpush2.msra.mxu0 0.0
  %339 = vmatprep.subr.mxu0 0.0
  %340 = vmatpush2.msra.mxu0 0.0
  %341 = vmatprep.subr.mxu0 0.0
  %342 = vmatpush2.msra.mxu0 0.0
  %343 = vmatprep.subr.mxu0 0.0
  %344 = vmatpush2.msra.mxu0 0.0
  %345 = vmatprep.subr.mxu0 0.0
  %346 = vmatpush2.msra.mxu0 0.0
  %347 = vmatprep.subr.mxu0 0.0
  %348 = vmatpush2.msra.mxu0 0.0
  %349 = vmatprep.subr.mxu0 0.0
  %350 = vmatpush2.msra.mxu0 0.0
  %351 = vmatprep.subr.mxu0 0.0
  %352 = vmatpush2.msra.mxu0 0.0
  %353 = vmatprep.subr.mxu0 0.0
  %354 = vmatpush2.msra.mxu0 0.0
  %355 = vmatprep.subr.mxu0 0.0
  %356 = vmatpush2.msra.mxu0 0.0
  %357 = vmatprep.subr.mxu0 0.0
  %358 = vmatpush2.msra.mxu0 0.0
  %359 = vmatprep.mubr.f32.mxu0 0.0
  %360 = vmatmul.mubr.f32.gmra.mxu0 %v100
  %v361 = vpop.f32.mrf.mxu0
  %v362 = vadd.f32 %v96, %v361
  %v363 = vpop.f32.mrf.mxu0
  %364 = vmatprep.mubr.f32.mxu0 0.0
  %365 = vmatmul.mubr.f32.gmra.mxu0 %v103
  %v366 = vpop.f32.mrf.mxu0
  %v367 = vadd.f32 %v96, %v366
  %v368 = vpop.f32.mrf.mxu0
  %369 = vmatprep.mubr.f32.mxu0 0.0
  %370 = vmatmul.mubr.f32.gmra.mxu0 %v106
  %v371 = vpop.f32.mrf.mxu0
  %v372 = vadd.f32 %v96, %v371
  %v373 = vpop.f32.mrf.mxu0
  %374 = vmatprep.mubr.f32.mxu0 0.0
  %375 = vmatmul.mubr.f32.gmra.mxu0 %v109
  %v376 = vpop.f32.mrf.mxu0
  %v377 = vadd.f32 %v96, %v376
  %v378 = vpop.f32.mrf.mxu0
  %379 = vmatprep.mubr.f32.mxu0 0.0
  %380 = vmatmul.mubr.f32.gmra.mxu0 %v112
  %v381 = vpop.f32.mrf.mxu0
  %v382 = vadd.f32 %v96, %v381
  %v383 = vpop.f32.mrf.mxu0
  %384 = vmatprep.mubr.f32.mxu0 0.0
  %385 = vmatmul.mubr.f32.gmra.mxu0 %v115
  %v386 = vpop.f32.mrf.mxu0
  %v387 = vadd.f32 %v96, %v386
  %v388 = vpop.f32.mrf.mxu0
  %389 = vmatprep.mubr.f32.mxu0 0.0
  %390 = vmatmul.mubr.f32.gmra.mxu0 %v118
  %v391 = vpop.f32.mrf.mxu0
  %v392 = vadd.f32 %v96, %v391
  %v393 = vpop.f32.mrf.mxu0
  %394 = vmatprep.mubr.f32.mxu0 0.0
  %395 = vmatmul.mubr.f32.gmra.mxu0 %v121
  %v396 = vpop.f32.mrf.mxu0
  %v397 = vadd.f32 %v96, %v396
  %v398 = vpop.f32.mrf.mxu0
  %399 = vmatprep.mubr.f32.mxu0 0.0
  %400 = vmatmul.mubr.f32.gmra.mxu0 %v124
  %v401 = vpop.f32.mrf.mxu0
  %v402 = vadd.f32 %v96, %v401
  %v403 = vpop.f32.mrf.mxu0
  %404 = vmatprep.mubr.f32.mxu0 0.0
  %405 = vmatmul.mubr.f32.gmra.mxu0 %v127
  %v406 = vpop.f32.mrf.mxu0
  %v407 = vadd.f32 %v96, %v406
  %v408 = vpop.f32.mrf.mxu0
  %409 = vmatprep.mubr.f32.mxu0 0.0
  %410 = vmatmul.mubr.f32.gmra.mxu0 %v130
  %v411 = vpop.f32.mrf.mxu0
  %v412 = vadd.f32 %v96, %v411
  %v413 = vpop.f32.mrf.mxu0
  %414 = vmatprep.mubr.f32.mxu0 0.0
  %415 = vmatmul.mubr.f32.gmra.mxu0 %v133
  %v416 = vpop.f32.mrf.mxu0
  %v417 = vadd.f32 %v96, %v416
  %v418 = vpop.f32.mrf.mxu0
  %419 = vmatprep.mubr.f32.mxu0 0.0
  %420 = vmatmul.mubr.f32.gmra.mxu0 %v136
  %v421 = vpop.f32.mrf.mxu0
  %v422 = vadd.f32 %v96, %v421
  %v423 = vpop.f32.mrf.mxu0
  %424 = vmatprep.mubr.f32.mxu0 0.0
  %425 = vmatmul.mubr.f32.gmra.mxu0 %v139
  %v426 = vpop.f32.mrf.mxu0
  %v427 = vadd.f32 %v96, %v426
  %v428 = vpop.f32.mrf.mxu0
  %429 = vmatprep.mubr.f32.mxu0 0.0
  %430 = vmatmul.mubr.f32.gmra.mxu0 %v142
  %v431 = vpop.f32.mrf.mxu0
  %v432 = vadd.f32 %v96, %v431
  %v433 = vpop.f32.mrf.mxu0
  %434 = vmatprep.mubr.f32.mxu0 0.0
  %435 = vmatmul.mubr.f32.gmra.mxu0 %v145
  %v436 = vpop.f32.mrf.mxu0
  %v437 = vadd.f32 %v96, %v436
  %v438 = vpop.f32.mrf.mxu0
  %439 = vmatprep.mubr.f32.mxu0 0.0
  %440 = vmatmul.mubr.f32.gmra.mxu0 %v148
  %v441 = vpop.f32.mrf.mxu0
  %v442 = vadd.f32 %v96, %v441
  %v443 = vpop.f32.mrf.mxu0
  %444 = vmatprep.mubr.f32.mxu0 0.0
  %445 = vmatmul.mubr.f32.gmra.mxu0 %v151
  %v446 = vpop.f32.mrf.mxu0
  %v447 = vadd.f32 %v96, %v446
  %v448 = vpop.f32.mrf.mxu0
  %449 = vmatprep.mubr.f32.mxu0 0.0
  %450 = vmatmul.mubr.f32.gmra.mxu0 %v154
  %v451 = vpop.f32.mrf.mxu0
  %v452 = vadd.f32 %v96, %v451
  %v453 = vpop.f32.mrf.mxu0
  %454 = vmatprep.mubr.f32.mxu0 0.0
  %455 = vmatmul.mubr.f32.gmra.mxu0 %v157
  %v456 = vpop.f32.mrf.mxu0
  %v457 = vadd.f32 %v96, %v456
  %v458 = vpop.f32.mrf.mxu0
  %459 = vmatprep.mubr.f32.mxu0 0.0
  %460 = vmatmul.mubr.f32.gmra.mxu0 %v160
  %v461 = vpop.f32.mrf.mxu0
  %v462 = vadd.f32 %v96, %v461
  %v463 = vpop.f32.mrf.mxu0
  %464 = vmatprep.mubr.f32.mxu0 0.0
  %465 = vmatmul.mubr.f32.gmra.mxu0 %v163
  %v466 = vpop.f32.mrf.mxu0
  %v467 = vadd.f32 %v96, %v466
  %v468 = vpop.f32.mrf.mxu0
  %469 = vmatprep.mubr.f32.mxu0 0.0
  %470 = vmatmul.mubr.f32.gmra.mxu0 %v166
  %v471 = vpop.f32.mrf.mxu0
  %v472 = vadd.f32 %v96, %v471
  %v473 = vpop.f32.mrf.mxu0
  %474 = vmatprep.mubr.f32.mxu0 0.0
  %475 = vmatmul.mubr.f32.gmra.mxu0 %v169
  %v476 = vpop.f32.mrf.mxu0
  %v477 = vadd.f32 %v96, %v476
  %v478 = vpop.f32.mrf.mxu0
  %479 = vmatprep.mubr.f32.mxu0 0.0
  %480 = vmatmul.mubr.f32.gmra.mxu0 %v172
  %v481 = vpop.f32.mrf.mxu0
  %v482 = vadd.f32 %v96, %v481
  %v483 = vpop.f32.mrf.mxu0
  %484 = vmatprep.mubr.f32.mxu0 0.0
  %485 = vmatmul.mubr.f32.gmra.mxu0 %v175
  %v486 = vpop.f32.mrf.mxu0
  %v487 = vadd.f32 %v96, %v486
  %v488 = vpop.f32.mrf.mxu0
  %489 = vmatprep.mubr.f32.mxu0 0.0
  %490 = vmatmul.mubr.f32.gmra.mxu0 %v178
  %v491 = vpop.f32.mrf.mxu0
  %v492 = vadd.f32 %v96, %v491
  %v493 = vpop.f32.mrf.mxu0
  %494 = vmatprep.mubr.f32.mxu0 0.0
  %495 = vmatmul.mubr.f32.gmra.mxu0 %v181
  %v496 = vpop.f32.mrf.mxu0
  %v497 = vadd.f32 %v96, %v496
  %v498 = vpop.f32.mrf.mxu0
  %499 = vmatprep.mubr.f32.mxu0 0.0
  %500 = vmatmul.mubr.f32.gmra.mxu0 %v184
  %v501 = vpop.f32.mrf.mxu0
  %v502 = vadd.f32 %v96, %v501
  %v503 = vpop.f32.mrf.mxu0
  %504 = vmatprep.mubr.f32.mxu0 0.0
  %505 = vmatmul.mubr.f32.gmra.mxu0 %v187
  %v506 = vpop.f32.mrf.mxu0
  %v507 = vadd.f32 %v96, %v506
  %v508 = vpop.f32.mrf.mxu0
  %509 = vmatprep.mubr.f32.mxu0 0.0
  %510 = vmatmul.mubr.f32.gmra.mxu0 %v190
  %v511 = vpop.f32.mrf.mxu0
  %v512 = vadd.f32 %v96, %v511
  %v513 = vpop.f32.mrf.mxu0
  %514 = vmatprep.mubr.f32.mxu0 0.0
  %515 = vmatmul.mubr.f32.gmra.mxu0 %v193
  %v516 = vpop.f32.mrf.mxu0
  %v517 = vadd.f32 %v96, %v516
  %v518 = vpop.f32.mrf.mxu0
  %519 = vmatprep.mubr.f32.mxu0 0.0
  %520 = vmatmul.mubr.f32.gmra.mxu0 %v196
  %v521 = vpop.f32.mrf.mxu0
  %v522 = vadd.f32 %v96, %v521
  %v523 = vpop.f32.mrf.mxu0
  %524 = vmatprep.mubr.f32.mxu0 0.0
  %525 = vmatmul.mubr.f32.gmra.mxu0 %v199
  %v526 = vpop.f32.mrf.mxu0
  %v527 = vadd.f32 %v96, %v526
  %v528 = vpop.f32.mrf.mxu0
  %529 = vmatprep.mubr.f32.mxu0 0.0
  %530 = vmatmul.mubr.f32.gmra.mxu0 %v202
  %v531 = vpop.f32.mrf.mxu0
  %v532 = vadd.f32 %v96, %v531
  %v533 = vpop.f32.mrf.mxu0
  %534 = vmatprep.mubr.f32.mxu0 0.0
  %535 = vmatmul.mubr.f32.gmra.mxu0 %v205
  %v536 = vpop.f32.mrf.mxu0
  %v537 = vadd.f32 %v96, %v536
  %v538 = vpop.f32.mrf.mxu0
  %539 = vmatprep.mubr.f32.mxu0 0.0
  %540 = vmatmul.mubr.f32.gmra.mxu0 %v208
  %v541 = vpop.f32.mrf.mxu0
  %v542 = vadd.f32 %v96, %v541
  %v543 = vpop.f32.mrf.mxu0
  %544 = vmatprep.mubr.f32.mxu0 0.0
  %545 = vmatmul.mubr.f32.gmra.mxu0 %v211
  %v546 = vpop.f32.mrf.mxu0
  %v547 = vadd.f32 %v96, %v546
  %v548 = vpop.f32.mrf.mxu0
  %549 = vmatprep.mubr.f32.mxu0 0.0
  %550 = vmatmul.mubr.f32.gmra.mxu0 %v214
  %v551 = vpop.f32.mrf.mxu0
  %v552 = vadd.f32 %v96, %v551
  %v553 = vpop.f32.mrf.mxu0
  %554 = vmatprep.mubr.f32.mxu0 0.0
  %555 = vmatmul.mubr.f32.gmra.mxu0 %v217
  %v556 = vpop.f32.mrf.mxu0
  %v557 = vadd.f32 %v96, %v556
  %v558 = vpop.f32.mrf.mxu0
  %559 = vmatprep.mubr.f32.mxu0 0.0
  %560 = vmatmul.mubr.f32.gmra.mxu0 %v220
  %v561 = vpop.f32.mrf.mxu0
  %v562 = vadd.f32 %v96, %v561
  %v563 = vpop.f32.mrf.mxu0
  %564 = vmatprep.mubr.f32.mxu0 0.0
  %565 = vmatmul.mubr.f32.gmra.mxu0 %v223
  %v566 = vpop.f32.mrf.mxu0
  %v567 = vadd.f32 %v96, %v566
  %v568 = vpop.f32.mrf.mxu0
  %569 = vmatprep.mubr.f32.mxu0 0.0
  %570 = vmatmul.mubr.f32.gmra.mxu0 %v226
  %v571 = vpop.f32.mrf.mxu0
  %v572 = vadd.f32 %v96, %v571
  %v573 = vpop.f32.mrf.mxu0
  %574 = vmatprep.mubr.f32.mxu0 0.0
  %575 = vmatmul.mubr.f32.gmra.mxu0 %v229
  %v576 = vpop.f32.mrf.mxu0
  %v577 = vadd.f32 %v96, %v576
  %v578 = vpop.f32.mrf.mxu0
  %579 = vmatprep.mubr.f32.mxu0 0.0
  %580 = vmatmul.mubr.f32.gmra.mxu0 %v232
  %v581 = vpop.f32.mrf.mxu0
  %v582 = vadd.f32 %v96, %v581
  %v583 = vpop.f32.mrf.mxu0
  %584 = vmatprep.mubr.f32.mxu0 0.0
  %585 = vmatmul.mubr.f32.gmra.mxu0 %v235
  %v586 = vpop.f32.mrf.mxu0
  %v587 = vadd.f32 %v96, %v586
  %v588 = vpop.f32.mrf.mxu0
  %589 = vmatprep.mubr.f32.mxu0 0.0
  %590 = vmatmul.mubr.f32.gmra.mxu0 %v238
  %v591 = vpop.f32.mrf.mxu0
  %v592 = vadd.f32 %v96, %v591
  %v593 = vpop.f32.mrf.mxu0
  %594 = vmatprep.mubr.f32.mxu0 0.0
  %595 = vmatmul.mubr.f32.gmra.mxu0 %v241
  %v596 = vpop.f32.mrf.mxu0
  %v597 = vadd.f32 %v96, %v596
  %v598 = vpop.f32.mrf.mxu0
  %599 = vmatprep.mubr.f32.mxu0 0.0
  %600 = vmatmul.mubr.f32.gmra.mxu0 %v244
  %v601 = vpop.f32.mrf.mxu0
  %v602 = vadd.f32 %v96, %v601
  %v603 = vpop.f32.mrf.mxu0
  %604 = vmatprep.mubr.f32.mxu0 0.0
  %605 = vmatmul.mubr.f32.gmra.mxu0 %v247
  %v606 = vpop.f32.mrf.mxu0
  %v607 = vadd.f32 %v96, %v606
  %v608 = vpop.f32.mrf.mxu0
  %609 = vmatprep.mubr.f32.mxu0 0.0
  %610 = vmatmul.mubr.f32.gmra.mxu0 %v250
  %v611 = vpop.f32.mrf.mxu0
  %v612 = vadd.f32 %v96, %v611
  %v613 = vpop.f32.mrf.mxu0
  %614 = vmatprep.mubr.f32.mxu0 0.0
  %615 = vmatmul.mubr.f32.gmra.mxu0 %v253
  %v616 = vpop.f32.mrf.mxu0
  %v617 = vadd.f32 %v96, %v616
  %v618 = vpop.f32.mrf.mxu0
  %619 = vmatprep.mubr.f32.mxu0 0.0
  %620 = vmatmul.mubr.f32.gmra.mxu0 %v256
  %v621 = vpop.f32.mrf.mxu0
  %v622 = vadd.f32 %v96, %v621
  %v623 = vpop.f32.mrf.mxu0
  %624 = vmatprep.mubr.f32.mxu0 0.0
  %625 = vmatmul.mubr.f32.gmra.mxu0 %v259
  %v626 = vpop.f32.mrf.mxu0
  %v627 = vadd.f32 %v96, %v626
  %v628 = vpop.f32.mrf.mxu0
  %629 = vmatprep.mubr.f32.mxu0 0.0
  %630 = vmatmul.mubr.f32.gmra.mxu0 %v262
  %v631 = vpop.f32.mrf.mxu0
  %v632 = vadd.f32 %v96, %v631
  %v633 = vpop.f32.mrf.mxu0
  %634 = vmatprep.mubr.f32.mxu0 0.0
  %635 = vmatmul.mubr.f32.gmra.mxu0 %v265
  %v636 = vpop.f32.mrf.mxu0
  %v637 = vadd.f32 %v96, %v636
  %v638 = vpop.f32.mrf.mxu0
  %639 = vmatprep.mubr.f32.mxu0 0.0
  %640 = vmatmul.mubr.f32.gmra.mxu0 %v268
  %v641 = vpop.f32.mrf.mxu0
  %v642 = vadd.f32 %v96, %v641
  %v643 = vpop.f32.mrf.mxu0
  %644 = vmatprep.mubr.f32.mxu0 0.0
  %645 = vmatmul.mubr.f32.gmra.mxu0 %v271
  %v646 = vpop.f32.mrf.mxu0
  %v647 = vadd.f32 %v96, %v646
  %v648 = vpop.f32.mrf.mxu0
  %649 = vmatprep.mubr.f32.mxu0 0.0
  %650 = vmatmul.mubr.f32.gmra.mxu0 %v274
  %v651 = vpop.f32.mrf.mxu0
  %v652 = vadd.f32 %v96, %v651
  %v653 = vpop.f32.mrf.mxu0
  %654 = vmatprep.mubr.f32.mxu0 0.0
  %655 = vmatmul.mubr.f32.gmra.mxu0 %v277
  %v656 = vpop.f32.mrf.mxu0
  %v657 = vadd.f32 %v96, %v656
  %v658 = vpop.f32.mrf.mxu0
  %659 = vmatprep.mubr.f32.mxu0 0.0
  %660 = vmatmul.mubr.f32.gmra.mxu0 %v280
  %v661 = vpop.f32.mrf.mxu0
  %v662 = vadd.f32 %v96, %v661
  %v663 = vpop.f32.mrf.mxu0
  %664 = vmatprep.mubr.f32.mxu0 0.0
  %665 = vmatmul.mubr.f32.gmra.mxu0 %v283
  %v666 = vpop.f32.mrf.mxu0
  %v667 = vadd.f32 %v96, %v666
  %v668 = vpop.f32.mrf.mxu0
  %669 = vmatprep.mubr.f32.mxu0 0.0
  %670 = vmatmul.mubr.f32.gmra.mxu0 %v286
  %v671 = vpop.f32.mrf.mxu0
  %v672 = vadd.f32 %v96, %v671
  %v673 = vpop.f32.mrf.mxu0
  %674 = vmatprep.mubr.f32.mxu0 0.0
  %675 = vmatmul.mubr.f32.gmra.mxu0 %v289
  %v676 = vpop.f32.mrf.mxu0
  %v677 = vadd.f32 %v96, %v676
  %v678 = vpop.f32.mrf.mxu0
  %679 = vdwg.mxu0
  %v680 = vmax.f32 %v362, 0.0
  %v681 = vmax.f32 %v367, 0.0
  %v682 = vmax.f32 %v372, 0.0
  %v683 = vmax.f32 %v377, 0.0
  %v684 = vmax.f32 %v382, 0.0
  %v685 = vmax.f32 %v387, 0.0
  %v686 = vmax.f32 %v392, 0.0
  %v687 = vmax.f32 %v397, 0.0
  %v688 = vmax.f32 %v402, 0.0
  %v689 = vmax.f32 %v407, 0.0
  %v690 = vmax.f32 %v412, 0.0
  %v691 = vmax.f32 %v417, 0.0
  %v692 = vmax.f32 %v422, 0.0
  %v693 = vmax.f32 %v427, 0.0
  %v694 = vmax.f32 %v432, 0.0
  %v695 = vmax.f32 %v437, 0.0
  %v696 = vmax.f32 %v442, 0.0
  %v697 = vmax.f32 %v447, 0.0
  %v698 = vmax.f32 %v452, 0.0
  %v699 = vmax.f32 %v457, 0.0
  %v700 = vmax.f32 %v462, 0.0
  %v701 = vmax.f32 %v467, 0.0
  %v702 = vmax.f32 %v472, 0.0
  %v703 = vmax.f32 %v477, 0.0
  %v704 = vmax.f32 %v482, 0.0
  %v705 = vmax.f32 %v487, 0.0
  %v706 = vmax.f32 %v492, 0.0
  %v707 = vmax.f32 %v497, 0.0
  %v708 = vmax.f32 %v502, 0.0
  %v709 = vmax.f32 %v507, 0.0
  %v710 = vmax.f32 %v512, 0.0
  %v711 = vmax.f32 %v517, 0.0
  %v712 = vmax.f32 %v522, 0.0
  %v713 = vmax.f32 %v527, 0.0
  %v714 = vmax.f32 %v532, 0.0
  %v715 = vmax.f32 %v537, 0.0
  %v716 = vmax.f32 %v542, 0.0
  %v717 = vmax.f32 %v547, 0.0
  %v718 = vmax.f32 %v552, 0.0
  %v719 = vmax.f32 %v557, 0.0
  %v720 = vmax.f32 %v562, 0.0
  %v721 = vmax.f32 %v567, 0.0
  %v722 = vmax.f32 %v572, 0.0
  %v723 = vmax.f32 %v577, 0.0
  %v724 = vmax.f32 %v582, 0.0
  %v725 = vmax.f32 %v587, 0.0
  %v726 = vmax.f32 %v592, 0.0
  %v727 = vmax.f32 %v597, 0.0
  %v728 = vmax.f32 %v602, 0.0
  %v729 = vmax.f32 %v607, 0.0
  %v730 = vmax.f32 %v612, 0.0
  %v731 = vmax.f32 %v617, 0.0
  %v732 = vmax.f32 %v622, 0.0
  %v733 = vmax.f32 %v627, 0.0
  %v734 = vmax.f32 %v632, 0.0
  %v735 = vmax.f32 %v637, 0.0
  %v736 = vmax.f32 %v642, 0.0
  %v737 = vmax.f32 %v647, 0.0
  %v738 = vmax.f32 %v652, 0.0
  %v739 = vmax.f32 %v657, 0.0
  %v740 = vmax.f32 %v662, 0.0
  %v741 = vmax.f32 %v667, 0.0
  %v742 = vmax.f32 %v672, 0.0
  %v743 = vmax.f32 %v677, 0.0
  %v744 = vld [vmem:[%s3] sm:$0xff]
  %v745 = vld [vmem:[%s3 + $0x8] sm:$0xff]
  %v746 = vld [vmem:[%s3 + $0x10] sm:$0xff]
  %v747 = vld [vmem:[%s3 + $0x18] sm:$0xff]
  %v748 = vld [vmem:[%s3 + $0x20] sm:$0xff]
  %v749 = vld [vmem:[%s3 + $0x28] sm:$0xff]
  %v750 = vld [vmem:[%s3 + $0x30] sm:$0xff]
  %v751 = vld [vmem:[%s3 + $0x38] sm:$0xff]
  %v752 = vld [vmem:[%s3 + $0x40] sm:$0xff]
  %v753 = vld [vmem:[%s3 + $0x48] sm:$0xff]
  %v754 = vld [vmem:[%s3 + $0x50] sm:$0xff]
  %v755 = vld [vmem:[%s3 + $0x58] sm:$0xff]
  %v756 = vld [vmem:[%s3 + $0x60] sm:$0xff]
  %v757 = vld [vmem:[%s3 + $0x68] sm:$0xff]
  %v758 = vld [vmem:[%s3 + $0x70] sm:$0xff]
  %v759 = vld [vmem:[%s3 + $0x78] sm:$0xff]
  %v760 = vld [vmem:[%s4] sm:$0x1]
  %v762 = vlaneseq
  %v763 = vshrl.u32 %v762, 7
  %v764 = vsub.s32 0, %v763
  %v765 = vrot.slane %v760, %v764
  %767 = vmatprep.subr.mxu0 0.0
  %768 = vmatpush1.msra.mxu0 %v759
  %769 = vmatprep.subr.mxu0 0.0
  %770 = vmatpush1.msra.mxu0 %v758
  %771 = vmatprep.subr.mxu0 0.0
  %772 = vmatpush1.msra.mxu0 %v757
  %773 = vmatprep.subr.mxu0 0.0
  %774 = vmatpush1.msra.mxu0 %v756
  %775 = vmatprep.subr.mxu0 0.0
  %776 = vmatpush1.msra.mxu0 %v755
  %777 = vmatprep.subr.mxu0 0.0
  %778 = vmatpush1.msra.mxu0 %v754
  %779 = vmatprep.subr.mxu0 0.0
  %780 = vmatpush1.msra.mxu0 %v753
  %781 = vmatprep.subr.mxu0 0.0
  %782 = vmatpush1.msra.mxu0 %v752
  %783 = vmatprep.subr.mxu0 0.0
  %784 = vmatpush1.msra.mxu0 %v751
  %785 = vmatprep.subr.mxu0 0.0
  %786 = vmatpush1.msra.mxu0 %v750
  %787 = vmatprep.subr.mxu0 0.0
  %788 = vmatpush1.msra.mxu0 %v749
  %789 = vmatprep.subr.mxu0 0.0
  %790 = vmatpush1.msra.mxu0 %v748
  %791 = vmatprep.subr.mxu0 0.0
  %792 = vmatpush1.msra.mxu0 %v747
  %793 = vmatprep.subr.mxu0 0.0
  %794 = vmatpush1.msra.mxu0 %v746
  %795 = vmatprep.subr.mxu0 0.0
  %796 = vmatpush1.msra.mxu0 %v745
  %797 = vmatprep.subr.mxu0 0.0
  %798 = vmatpush1.msra.mxu0 %v744
  %799 = vmatprep.subr.mxu0 0.0
  %800 = vmatpush2.msra.mxu0 0.0
  %801 = vmatprep.subr.mxu0 0.0
  %802 = vmatpush2.msra.mxu0 0.0
  %803 = vmatprep.subr.mxu0 0.0
  %804 = vmatpush2.msra.mxu0 0.0
  %805 = vmatprep.subr.mxu0 0.0
  %806 = vmatpush2.msra.mxu0 0.0
  %807 = vmatprep.subr.mxu0 0.0
  %808 = vmatpush2.msra.mxu0 0.0
  %809 = vmatprep.subr.mxu0 0.0
  %810 = vmatpush2.msra.mxu0 0.0
  %811 = vmatprep.subr.mxu0 0.0
  %812 = vmatpush2.msra.mxu0 0.0
  %813 = vmatprep.subr.mxu0 0.0
  %814 = vmatpush2.msra.mxu0 0.0
  %815 = vmatprep.subr.mxu0 0.0
  %816 = vmatpush2.msra.mxu0 0.0
  %817 = vmatprep.subr.mxu0 0.0
  %818 = vmatpush2.msra.mxu0 0.0
  %819 = vmatprep.subr.mxu0 0.0
  %820 = vmatpush2.msra.mxu0 0.0
  %821 = vmatprep.subr.mxu0 0.0
  %822 = vmatpush2.msra.mxu0 0.0
  %823 = vmatprep.subr.mxu0 0.0
  %824 = vmatpush2.msra.mxu0 0.0
  %825 = vmatprep.subr.mxu0 0.0
  %826 = vmatpush2.msra.mxu0 0.0
  %827 = vmatprep.subr.mxu0 0.0
  %828 = vmatpush2.msra.mxu0 0.0
  %829 = vmatprep.subr.mxu0 0.0
  %830 = vmatpush2.msra.mxu0 0.0
  %831 = vmatprep.mubr.f32.mxu0 0.0
  %832 = vmatmul.mubr.f32.gmra.mxu0 %v680
  %v833 = vpop.f32.mrf.mxu0
  %v834 = vadd.f32 %v765, %v833
  %v835 = vpop.f32.mrf.mxu0
  %836 = vmatprep.mubr.f32.mxu0 0.0
  %837 = vmatmul.mubr.f32.gmra.mxu0 %v681
  %v838 = vpop.f32.mrf.mxu0
  %v839 = vadd.f32 %v765, %v838
  %v840 = vpop.f32.mrf.mxu0
  %841 = vmatprep.mubr.f32.mxu0 0.0
  %842 = vmatmul.mubr.f32.gmra.mxu0 %v682
  %v843 = vpop.f32.mrf.mxu0
  %v844 = vadd.f32 %v765, %v843
  %v845 = vpop.f32.mrf.mxu0
  %846 = vmatprep.mubr.f32.mxu0 0.0
  %847 = vmatmul.mubr.f32.gmra.mxu0 %v683
  %v848 = vpop.f32.mrf.mxu0
  %v849 = vadd.f32 %v765, %v848
  %v850 = vpop.f32.mrf.mxu0
  %851 = vmatprep.mubr.f32.mxu0 0.0
  %852 = vmatmul.mubr.f32.gmra.mxu0 %v684
  %v853 = vpop.f32.mrf.mxu0
  %v854 = vadd.f32 %v765, %v853
  %v855 = vpop.f32.mrf.mxu0
  %856 = vmatprep.mubr.f32.mxu0 0.0
  %857 = vmatmul.mubr.f32.gmra.mxu0 %v685
  %v858 = vpop.f32.mrf.mxu0
  %v859 = vadd.f32 %v765, %v858
  %v860 = vpop.f32.mrf.mxu0
  %861 = vmatprep.mubr.f32.mxu0 0.0
  %862 = vmatmul.mubr.f32.gmra.mxu0 %v686
  %v863 = vpop.f32.mrf.mxu0
  %v864 = vadd.f32 %v765, %v863
  %v865 = vpop.f32.mrf.mxu0
  %866 = vmatprep.mubr.f32.mxu0 0.0
  %867 = vmatmul.mubr.f32.gmra.mxu0 %v687
  %v868 = vpop.f32.mrf.mxu0
  %v869 = vadd.f32 %v765, %v868
  %v870 = vpop.f32.mrf.mxu0
  %871 = vmatprep.mubr.f32.mxu0 0.0
  %872 = vmatmul.mubr.f32.gmra.mxu0 %v688
  %v873 = vpop.f32.mrf.mxu0
  %v874 = vadd.f32 %v765, %v873
  %v875 = vpop.f32.mrf.mxu0
  %876 = vmatprep.mubr.f32.mxu0 0.0
  %877 = vmatmul.mubr.f32.gmra.mxu0 %v689
  %v878 = vpop.f32.mrf.mxu0
  %v879 = vadd.f32 %v765, %v878
  %v880 = vpop.f32.mrf.mxu0
  %881 = vmatprep.mubr.f32.mxu0 0.0
  %882 = vmatmul.mubr.f32.gmra.mxu0 %v690
  %v883 = vpop.f32.mrf.mxu0
  %v884 = vadd.f32 %v765, %v883
  %v885 = vpop.f32.mrf.mxu0
  %886 = vmatprep.mubr.f32.mxu0 0.0
  %887 = vmatmul.mubr.f32.gmra.mxu0 %v691
  %v888 = vpop.f32.mrf.mxu0
  %v889 = vadd.f32 %v765, %v888
  %v890 = vpop.f32.mrf.mxu0
  %891 = vmatprep.mubr.f32.mxu0 0.0
  %892 = vmatmul.mubr.f32.gmra.mxu0 %v692
  %v893 = vpop.f32.mrf.mxu0
  %v894 = vadd.f32 %v765, %v893
  %v895 = vpop.f32.mrf.mxu0
  %896 = vmatprep.mubr.f32.mxu0 0.0
  %897 = vmatmul.mubr.f32.gmra.mxu0 %v693
  %v898 = vpop.f32.mrf.mxu0
  %v899 = vadd.f32 %v765, %v898
  %v900 = vpop.f32.mrf.mxu0
  %901 = vmatprep.mubr.f32.mxu0 0.0
  %902 = vmatmul.mubr.f32.gmra.mxu0 %v694
  %v903 = vpop.f32.mrf.mxu0
  %v904 = vadd.f32 %v765, %v903
  %v905 = vpop.f32.mrf.mxu0
  %906 = vmatprep.mubr.f32.mxu0 0.0
  %907 = vmatmul.mubr.f32.gmra.mxu0 %v695
  %v908 = vpop.f32.mrf.mxu0
  %v909 = vadd.f32 %v765, %v908
  %v910 = vpop.f32.mrf.mxu0
  %911 = vmatprep.mubr.f32.mxu0 0.0
  %912 = vmatmul.mubr.f32.gmra.mxu0 %v696
  %v913 = vpop.f32.mrf.mxu0
  %v914 = vadd.f32 %v765, %v913
  %v915 = vpop.f32.mrf.mxu0
  %916 = vmatprep.mubr.f32.mxu0 0.0
  %917 = vmatmul.mubr.f32.gmra.mxu0 %v697
  %v918 = vpop.f32.mrf.mxu0
  %v919 = vadd.f32 %v765, %v918
  %v920 = vpop.f32.mrf.mxu0
  %921 = vmatprep.mubr.f32.mxu0 0.0
  %922 = vmatmul.mubr.f32.gmra.mxu0 %v698
  %v923 = vpop.f32.mrf.mxu0
  %v924 = vadd.f32 %v765, %v923
  %v925 = vpop.f32.mrf.mxu0
  %926 = vmatprep.mubr.f32.mxu0 0.0
  %927 = vmatmul.mubr.f32.gmra.mxu0 %v699
  %v928 = vpop.f32.mrf.mxu0
  %v929 = vadd.f32 %v765, %v928
  %v930 = vpop.f32.mrf.mxu0
  %931 = vmatprep.mubr.f32.mxu0 0.0
  %932 = vmatmul.mubr.f32.gmra.mxu0 %v700
  %v933 = vpop.f32.mrf.mxu0
  %v934 = vadd.f32 %v765, %v933
  %v935 = vpop.f32.mrf.mxu0
  %936 = vmatprep.mubr.f32.mxu0 0.0
  %937 = vmatmul.mubr.f32.gmra.mxu0 %v701
  %v938 = vpop.f32.mrf.mxu0
  %v939 = vadd.f32 %v765, %v938
  %v940 = vpop.f32.mrf.mxu0
  %941 = vmatprep.mubr.f32.mxu0 0.0
  %942 = vmatmul.mubr.f32.gmra.mxu0 %v702
  %v943 = vpop.f32.mrf.mxu0
  %v944 = vadd.f32 %v765, %v943
  %v945 = vpop.f32.mrf.mxu0
  %946 = vmatprep.mubr.f32.mxu0 0.0
  %947 = vmatmul.mubr.f32.gmra.mxu0 %v703
  %v948 = vpop.f32.mrf.mxu0
  %v949 = vadd.f32 %v765, %v948
  %v950 = vpop.f32.mrf.mxu0
  %951 = vmatprep.mubr.f32.mxu0 0.0
  %952 = vmatmul.mubr.f32.gmra.mxu0 %v704
  %v953 = vpop.f32.mrf.mxu0
  %v954 = vadd.f32 %v765, %v953
  %v955 = vpop.f32.mrf.mxu0
  %956 = vmatprep.mubr.f32.mxu0 0.0
  %957 = vmatmul.mubr.f32.gmra.mxu0 %v705
  %v958 = vpop.f32.mrf.mxu0
  %v959 = vadd.f32 %v765, %v958
  %v960 = vpop.f32.mrf.mxu0
  %961 = vmatprep.mubr.f32.mxu0 0.0
  %962 = vmatmul.mubr.f32.gmra.mxu0 %v706
  %v963 = vpop.f32.mrf.mxu0
  %v964 = vadd.f32 %v765, %v963
  %v965 = vpop.f32.mrf.mxu0
  %966 = vmatprep.mubr.f32.mxu0 0.0
  %967 = vmatmul.mubr.f32.gmra.mxu0 %v707
  %v968 = vpop.f32.mrf.mxu0
  %v969 = vadd.f32 %v765, %v968
  %v970 = vpop.f32.mrf.mxu0
  %971 = vmatprep.mubr.f32.mxu0 0.0
  %972 = vmatmul.mubr.f32.gmra.mxu0 %v708
  %v973 = vpop.f32.mrf.mxu0
  %v974 = vadd.f32 %v765, %v973
  %v975 = vpop.f32.mrf.mxu0
  %976 = vmatprep.mubr.f32.mxu0 0.0
  %977 = vmatmul.mubr.f32.gmra.mxu0 %v709
  %v978 = vpop.f32.mrf.mxu0
  %v979 = vadd.f32 %v765, %v978
  %v980 = vpop.f32.mrf.mxu0
  %981 = vmatprep.mubr.f32.mxu0 0.0
  %982 = vmatmul.mubr.f32.gmra.mxu0 %v710
  %v983 = vpop.f32.mrf.mxu0
  %v984 = vadd.f32 %v765, %v983
  %v985 = vpop.f32.mrf.mxu0
  %986 = vmatprep.mubr.f32.mxu0 0.0
  %987 = vmatmul.mubr.f32.gmra.mxu0 %v711
  %v988 = vpop.f32.mrf.mxu0
  %v989 = vadd.f32 %v765, %v988
  %v990 = vpop.f32.mrf.mxu0
  %991 = vmatprep.mubr.f32.mxu0 0.0
  %992 = vmatmul.mubr.f32.gmra.mxu0 %v712
  %v993 = vpop.f32.mrf.mxu0
  %v994 = vadd.f32 %v765, %v993
  %v995 = vpop.f32.mrf.mxu0
  %996 = vmatprep.mubr.f32.mxu0 0.0
  %997 = vmatmul.mubr.f32.gmra.mxu0 %v713
  %v998 = vpop.f32.mrf.mxu0
  %v999 = vadd.f32 %v765, %v998
  %v1000 = vpop.f32.mrf.mxu0
  %1001 = vmatprep.mubr.f32.mxu0 0.0
  %1002 = vmatmul.mubr.f32.gmra.mxu0 %v714
  %v1003 = vpop.f32.mrf.mxu0
  %v1004 = vadd.f32 %v765, %v1003
  %v1005 = vpop.f32.mrf.mxu0
  %1006 = vmatprep.mubr.f32.mxu0 0.0
  %1007 = vmatmul.mubr.f32.gmra.mxu0 %v715
  %v1008 = vpop.f32.mrf.mxu0
  %v1009 = vadd.f32 %v765, %v1008
  %v1010 = vpop.f32.mrf.mxu0
  %1011 = vmatprep.mubr.f32.mxu0 0.0
  %1012 = vmatmul.mubr.f32.gmra.mxu0 %v716
  %v1013 = vpop.f32.mrf.mxu0
  %v1014 = vadd.f32 %v765, %v1013
  %v1015 = vpop.f32.mrf.mxu0
  %1016 = vmatprep.mubr.f32.mxu0 0.0
  %1017 = vmatmul.mubr.f32.gmra.mxu0 %v717
  %v1018 = vpop.f32.mrf.mxu0
  %v1019 = vadd.f32 %v765, %v1018
  %v1020 = vpop.f32.mrf.mxu0
  %1021 = vmatprep.mubr.f32.mxu0 0.0
  %1022 = vmatmul.mubr.f32.gmra.mxu0 %v718
  %v1023 = vpop.f32.mrf.mxu0
  %v1024 = vadd.f32 %v765, %v1023
  %v1025 = vpop.f32.mrf.mxu0
  %1026 = vmatprep.mubr.f32.mxu0 0.0
  %1027 = vmatmul.mubr.f32.gmra.mxu0 %v719
  %v1028 = vpop.f32.mrf.mxu0
  %v1029 = vadd.f32 %v765, %v1028
  %v1030 = vpop.f32.mrf.mxu0
  %1031 = vmatprep.mubr.f32.mxu0 0.0
  %1032 = vmatmul.mubr.f32.gmra.mxu0 %v720
  %v1033 = vpop.f32.mrf.mxu0
  %v1034 = vadd.f32 %v765, %v1033
  %v1035 = vpop.f32.mrf.mxu0
  %1036 = vmatprep.mubr.f32.mxu0 0.0
  %1037 = vmatmul.mubr.f32.gmra.mxu0 %v721
  %v1038 = vpop.f32.mrf.mxu0
  %v1039 = vadd.f32 %v765, %v1038
  %v1040 = vpop.f32.mrf.mxu0
  %1041 = vmatprep.mubr.f32.mxu0 0.0
  %1042 = vmatmul.mubr.f32.gmra.mxu0 %v722
  %v1043 = vpop.f32.mrf.mxu0
  %v1044 = vadd.f32 %v765, %v1043
  %v1045 = vpop.f32.mrf.mxu0
  %1046 = vmatprep.mubr.f32.mxu0 0.0
  %1047 = vmatmul.mubr.f32.gmra.mxu0 %v723
  %v1048 = vpop.f32.mrf.mxu0
  %v1049 = vadd.f32 %v765, %v1048
  %v1050 = vpop.f32.mrf.mxu0
  %1051 = vmatprep.mubr.f32.mxu0 0.0
  %1052 = vmatmul.mubr.f32.gmra.mxu0 %v724
  %v1053 = vpop.f32.mrf.mxu0
  %v1054 = vadd.f32 %v765, %v1053
  %v1055 = vpop.f32.mrf.mxu0
  %1056 = vmatprep.mubr.f32.mxu0 0.0
  %1057 = vmatmul.mubr.f32.gmra.mxu0 %v725
  %v1058 = vpop.f32.mrf.mxu0
  %v1059 = vadd.f32 %v765, %v1058
  %v1060 = vpop.f32.mrf.mxu0
  %1061 = vmatprep.mubr.f32.mxu0 0.0
  %1062 = vmatmul.mubr.f32.gmra.mxu0 %v726
  %v1063 = vpop.f32.mrf.mxu0
  %v1064 = vadd.f32 %v765, %v1063
  %v1065 = vpop.f32.mrf.mxu0
  %1066 = vmatprep.mubr.f32.mxu0 0.0
  %1067 = vmatmul.mubr.f32.gmra.mxu0 %v727
  %v1068 = vpop.f32.mrf.mxu0
  %v1069 = vadd.f32 %v765, %v1068
  %v1070 = vpop.f32.mrf.mxu0
  %1071 = vmatprep.mubr.f32.mxu0 0.0
  %1072 = vmatmul.mubr.f32.gmra.mxu0 %v728
  %v1073 = vpop.f32.mrf.mxu0
  %v1074 = vadd.f32 %v765, %v1073
  %v1075 = vpop.f32.mrf.mxu0
  %1076 = vmatprep.mubr.f32.mxu0 0.0
  %1077 = vmatmul.mubr.f32.gmra.mxu0 %v729
  %v1078 = vpop.f32.mrf.mxu0
  %v1079 = vadd.f32 %v765, %v1078
  %v1080 = vpop.f32.mrf.mxu0
  %1081 = vmatprep.mubr.f32.mxu0 0.0
  %1082 = vmatmul.mubr.f32.gmra.mxu0 %v730
  %v1083 = vpop.f32.mrf.mxu0
  %v1084 = vadd.f32 %v765, %v1083
  %v1085 = vpop.f32.mrf.mxu0
  %1086 = vmatprep.mubr.f32.mxu0 0.0
  %1087 = vmatmul.mubr.f32.gmra.mxu0 %v731
  %v1088 = vpop.f32.mrf.mxu0
  %v1089 = vadd.f32 %v765, %v1088
  %v1090 = vpop.f32.mrf.mxu0
  %1091 = vmatprep.mubr.f32.mxu0 0.0
  %1092 = vmatmul.mubr.f32.gmra.mxu0 %v732
  %v1093 = vpop.f32.mrf.mxu0
  %v1094 = vadd.f32 %v765, %v1093
  %v1095 = vpop.f32.mrf.mxu0
  %1096 = vmatprep.mubr.f32.mxu0 0.0
  %1097 = vmatmul.mubr.f32.gmra.mxu0 %v733
  %v1098 = vpop.f32.mrf.mxu0
  %v1099 = vadd.f32 %v765, %v1098
  %v1100 = vpop.f32.mrf.mxu0
  %1101 = vmatprep.mubr.f32.mxu0 0.0
  %1102 = vmatmul.mubr.f32.gmra.mxu0 %v734
  %v1103 = vpop.f32.mrf.mxu0
  %v1104 = vadd.f32 %v765, %v1103
  %v1105 = vpop.f32.mrf.mxu0
  %1106 = vmatprep.mubr.f32.mxu0 0.0
  %1107 = vmatmul.mubr.f32.gmra.mxu0 %v735
  %v1108 = vpop.f32.mrf.mxu0
  %v1109 = vadd.f32 %v765, %v1108
  %v1110 = vpop.f32.mrf.mxu0
  %1111 = vmatprep.mubr.f32.mxu0 0.0
  %1112 = vmatmul.mubr.f32.gmra.mxu0 %v736
  %v1113 = vpop.f32.mrf.mxu0
  %v1114 = vadd.f32 %v765, %v1113
  %v1115 = vpop.f32.mrf.mxu0
  %1116 = vmatprep.mubr.f32.mxu0 0.0
  %1117 = vmatmul.mubr.f32.gmra.mxu0 %v737
  %v1118 = vpop.f32.mrf.mxu0
  %v1119 = vadd.f32 %v765, %v1118
  %v1120 = vpop.f32.mrf.mxu0
  %1121 = vmatprep.mubr.f32.mxu0 0.0
  %1122 = vmatmul.mubr.f32.gmra.mxu0 %v738
  %v1123 = vpop.f32.mrf.mxu0
  %v1124 = vadd.f32 %v765, %v1123
  %v1125 = vpop.f32.mrf.mxu0
  %1126 = vmatprep.mubr.f32.mxu0 0.0
  %1127 = vmatmul.mubr.f32.gmra.mxu0 %v739
  %v1128 = vpop.f32.mrf.mxu0
  %v1129 = vadd.f32 %v765, %v1128
  %v1130 = vpop.f32.mrf.mxu0
  %1131 = vmatprep.mubr.f32.mxu0 0.0
  %1132 = vmatmul.mubr.f32.gmra.mxu0 %v740
  %v1133 = vpop.f32.mrf.mxu0
  %v1134 = vadd.f32 %v765, %v1133
  %v1135 = vpop.f32.mrf.mxu0
  %1136 = vmatprep.mubr.f32.mxu0 0.0
  %1137 = vmatmul.mubr.f32.gmra.mxu0 %v741
  %v1138 = vpop.f32.mrf.mxu0
  %v1139 = vadd.f32 %v765, %v1138
  %v1140 = vpop.f32.mrf.mxu0
  %1141 = vmatprep.mubr.f32.mxu0 0.0
  %1142 = vmatmul.mubr.f32.gmra.mxu0 %v742
  %v1143 = vpop.f32.mrf.mxu0
  %v1144 = vadd.f32 %v765, %v1143
  %v1145 = vpop.f32.mrf.mxu0
  %1146 = vmatprep.mubr.f32.mxu0 0.0
  %1147 = vmatmul.mubr.f32.gmra.mxu0 %v743
  %v1148 = vpop.f32.mrf.mxu0
  %v1149 = vadd.f32 %v765, %v1148
  %v1150 = vpop.f32.mrf.mxu0
  %1151 = vdwg.mxu0
  %v1152 = vmax.f32 %v834, 0.0
  %v1153 = vmax.f32 %v839, 0.0
  %v1154 = vmax.f32 %v844, 0.0
  %v1155 = vmax.f32 %v849, 0.0
  %v1156 = vmax.f32 %v854, 0.0
  %v1157 = vmax.f32 %v859, 0.0
  %v1158 = vmax.f32 %v864, 0.0
  %v1159 = vmax.f32 %v869, 0.0
  %v1160 = vmax.f32 %v874, 0.0
  %v1161 = vmax.f32 %v879, 0.0
  %v1162 = vmax.f32 %v884, 0.0
  %v1163 = vmax.f32 %v889, 0.0
  %v1164 = vmax.f32 %v894, 0.0
  %v1165 = vmax.f32 %v899, 0.0
  %v1166 = vmax.f32 %v904, 0.0
  %v1167 = vmax.f32 %v909, 0.0
  %v1168 = vmax.f32 %v914, 0.0
  %v1169 = vmax.f32 %v919, 0.0
  %v1170 = vmax.f32 %v924, 0.0
  %v1171 = vmax.f32 %v929, 0.0
  %v1172 = vmax.f32 %v934, 0.0
  %v1173 = vmax.f32 %v939, 0.0
  %v1174 = vmax.f32 %v944, 0.0
  %v1175 = vmax.f32 %v949, 0.0
  %v1176 = vmax.f32 %v954, 0.0
  %v1177 = vmax.f32 %v959, 0.0
  %v1178 = vmax.f32 %v964, 0.0
  %v1179 = vmax.f32 %v969, 0.0
  %v1180 = vmax.f32 %v974, 0.0
  %v1181 = vmax.f32 %v979, 0.0
  %v1182 = vmax.f32 %v984, 0.0
  %v1183 = vmax.f32 %v989, 0.0
  %v1184 = vmax.f32 %v994, 0.0
  %v1185 = vmax.f32 %v999, 0.0
  %v1186 = vmax.f32 %v1004, 0.0
  %v1187 = vmax.f32 %v1009, 0.0
  %v1188 = vmax.f32 %v1014, 0.0
  %v1189 = vmax.f32 %v1019, 0.0
  %v1190 = vmax.f32 %v1024, 0.0
  %v1191 = vmax.f32 %v1029, 0.0
  %v1192 = vmax.f32 %v1034, 0.0
  %v1193 = vmax.f32 %v1039, 0.0
  %v1194 = vmax.f32 %v1044, 0.0
  %v1195 = vmax.f32 %v1049, 0.0
  %v1196 = vmax.f32 %v1054, 0.0
  %v1197 = vmax.f32 %v1059, 0.0
  %v1198 = vmax.f32 %v1064, 0.0
  %v1199 = vmax.f32 %v1069, 0.0
  %v1200 = vmax.f32 %v1074, 0.0
  %v1201 = vmax.f32 %v1079, 0.0
  %v1202 = vmax.f32 %v1084, 0.0
  %v1203 = vmax.f32 %v1089, 0.0
  %v1204 = vmax.f32 %v1094, 0.0
  %v1205 = vmax.f32 %v1099, 0.0
  %v1206 = vmax.f32 %v1104, 0.0
  %v1207 = vmax.f32 %v1109, 0.0
  %v1208 = vmax.f32 %v1114, 0.0
  %v1209 = vmax.f32 %v1119, 0.0
  %v1210 = vmax.f32 %v1124, 0.0
  %v1211 = vmax.f32 %v1129, 0.0
  %v1212 = vmax.f32 %v1134, 0.0
  %v1213 = vmax.f32 %v1139, 0.0
  %v1214 = vmax.f32 %v1144, 0.0
  %v1215 = vmax.f32 %v1149, 0.0
  %v1216 = vld [vmem:[%s5] sm:$0xff]
  %v1217 = vld [vmem:[%s5 + $0x8] sm:$0xff]
  %v1218 = vld [vmem:[%s5 + $0x10] sm:$0xff]
  %v1219 = vld [vmem:[%s5 + $0x18] sm:$0xff]
  %v1220 = vld [vmem:[%s5 + $0x20] sm:$0xff]
  %v1221 = vld [vmem:[%s5 + $0x28] sm:$0xff]
  %v1222 = vld [vmem:[%s5 + $0x30] sm:$0xff]
  %v1223 = vld [vmem:[%s5 + $0x38] sm:$0xff]
  %v1224 = vld [vmem:[%s5 + $0x40] sm:$0xff]
  %v1225 = vld [vmem:[%s5 + $0x48] sm:$0xff]
  %v1226 = vld [vmem:[%s5 + $0x50] sm:$0xff]
  %v1227 = vld [vmem:[%s5 + $0x58] sm:$0xff]
  %v1228 = vld [vmem:[%s5 + $0x60] sm:$0xff]
  %v1229 = vld [vmem:[%s5 + $0x68] sm:$0xff]
  %v1230 = vld [vmem:[%s5 + $0x70] sm:$0xff]
  %v1231 = vld [vmem:[%s5 + $0x78] sm:$0xff]
  %v1232 = vld [vmem:[%s6] sm:$0x1]
  %v1234 = vlaneseq
  %v1235 = vshrl.u32 %v1234, 7
  %v1236 = vsub.s32 0, %v1235
  %v1237 = vrot.slane %v1232, %v1236
  %1239 = vmatprep.subr.mxu0 0.0
  %1240 = vmatpush1.msra.mxu0 %v1231
  %1241 = vmatprep.subr.mxu0 0.0
  %1242 = vmatpush1.msra.mxu0 %v1230
  %1243 = vmatprep.subr.mxu0 0.0
  %1244 = vmatpush1.msra.mxu0 %v1229
  %1245 = vmatprep.subr.mxu0 0.0
  %1246 = vmatpush1.msra.mxu0 %v1228
  %1247 = vmatprep.subr.mxu0 0.0
  %1248 = vmatpush1.msra.mxu0 %v1227
  %1249 = vmatprep.subr.mxu0 0.0
  %1250 = vmatpush1.msra.mxu0 %v1226
  %1251 = vmatprep.subr.mxu0 0.0
  %1252 = vmatpush1.msra.mxu0 %v1225
  %1253 = vmatprep.subr.mxu0 0.0
  %1254 = vmatpush1.msra.mxu0 %v1224
  %1255 = vmatprep.subr.mxu0 0.0
  %1256 = vmatpush1.msra.mxu0 %v1223
  %1257 = vmatprep.subr.mxu0 0.0
  %1258 = vmatpush1.msra.mxu0 %v1222
  %1259 = vmatprep.subr.mxu0 0.0
  %1260 = vmatpush1.msra.mxu0 %v1221
  %1261 = vmatprep.subr.mxu0 0.0
  %1262 = vmatpush1.msra.mxu0 %v1220
  %1263 = vmatprep.subr.mxu0 0.0
  %1264 = vmatpush1.msra.mxu0 %v1219
  %1265 = vmatprep.subr.mxu0 0.0
  %1266 = vmatpush1.msra.mxu0 %v1218
  %1267 = vmatprep.subr.mxu0 0.0
  %1268 = vmatpush1.msra.mxu0 %v1217
  %1269 = vmatprep.subr.mxu0 0.0
  %1270 = vmatpush1.msra.mxu0 %v1216
  %1271 = vmatprep.subr.mxu0 0.0
  %1272 = vmatpush2.msra.mxu0 0.0
  %1273 = vmatprep.subr.mxu0 0.0
  %1274 = vmatpush2.msra.mxu0 0.0
  %1275 = vmatprep.subr.mxu0 0.0
  %1276 = vmatpush2.msra.mxu0 0.0
  %1277 = vmatprep.subr.mxu0 0.0
  %1278 = vmatpush2.msra.mxu0 0.0
  %1279 = vmatprep.subr.mxu0 0.0
  %1280 = vmatpush2.msra.mxu0 0.0
  %1281 = vmatprep.subr.mxu0 0.0
  %1282 = vmatpush2.msra.mxu0 0.0
  %1283 = vmatprep.subr.mxu0 0.0
  %1284 = vmatpush2.msra.mxu0 0.0
  %1285 = vmatprep.subr.mxu0 0.0
  %1286 = vmatpush2.msra.mxu0 0.0
  %1287 = vmatprep.subr.mxu0 0.0
  %1288 = vmatpush2.msra.mxu0 0.0
  %1289 = vmatprep.subr.mxu0 0.0
  %1290 = vmatpush2.msra.mxu0 0.0
  %1291 = vmatprep.subr.mxu0 0.0
  %1292 = vmatpush2.msra.mxu0 0.0
  %1293 = vmatprep.subr.mxu0 0.0
  %1294 = vmatpush2.msra.mxu0 0.0
  %1295 = vmatprep.subr.mxu0 0.0
  %1296 = vmatpush2.msra.mxu0 0.0
  %1297 = vmatprep.subr.mxu0 0.0
  %1298 = vmatpush2.msra.mxu0 0.0
  %1299 = vmatprep.subr.mxu0 0.0
  %1300 = vmatpush2.msra.mxu0 0.0
  %1301 = vmatprep.subr.mxu0 0.0
  %1302 = vmatpush2.msra.mxu0 0.0
  %1303 = vmatprep.mubr.f32.mxu0 0.0
  %1304 = vmatmul.mubr.f32.gmra.mxu0 %v1152
  %v1305 = vpop.f32.mrf.mxu0
  %v1306 = vadd.f32 %v1237, %v1305
  %v1307 = vpop.f32.mrf.mxu0
  %1308 = vmatprep.mubr.f32.mxu0 0.0
  %1309 = vmatmul.mubr.f32.gmra.mxu0 %v1153
  %v1310 = vpop.f32.mrf.mxu0
  %v1311 = vadd.f32 %v1237, %v1310
  %v1312 = vpop.f32.mrf.mxu0
  %1313 = vmatprep.mubr.f32.mxu0 0.0
  %1314 = vmatmul.mubr.f32.gmra.mxu0 %v1154
  %v1315 = vpop.f32.mrf.mxu0
  %v1316 = vadd.f32 %v1237, %v1315
  %v1317 = vpop.f32.mrf.mxu0
  %1318 = vmatprep.mubr.f32.mxu0 0.0
  %1319 = vmatmul.mubr.f32.gmra.mxu0 %v1155
  %v1320 = vpop.f32.mrf.mxu0
  %v1321 = vadd.f32 %v1237, %v1320
  %v1322 = vpop.f32.mrf.mxu0
  %1323 = vmatprep.mubr.f32.mxu0 0.0
  %1324 = vmatmul.mubr.f32.gmra.mxu0 %v1156
  %v1325 = vpop.f32.mrf.mxu0
  %v1326 = vadd.f32 %v1237, %v1325
  %v1327 = vpop.f32.mrf.mxu0
  %1328 = vmatprep.mubr.f32.mxu0 0.0
  %1329 = vmatmul.mubr.f32.gmra.mxu0 %v1157
  %v1330 = vpop.f32.mrf.mxu0
  %v1331 = vadd.f32 %v1237, %v1330
  %v1332 = vpop.f32.mrf.mxu0
  %1333 = vmatprep.mubr.f32.mxu0 0.0
  %1334 = vmatmul.mubr.f32.gmra.mxu0 %v1158
  %v1335 = vpop.f32.mrf.mxu0
  %v1336 = vadd.f32 %v1237, %v1335
  %v1337 = vpop.f32.mrf.mxu0
  %1338 = vmatprep.mubr.f32.mxu0 0.0
  %1339 = vmatmul.mubr.f32.gmra.mxu0 %v1159
  %v1340 = vpop.f32.mrf.mxu0
  %v1341 = vadd.f32 %v1237, %v1340
  %v1342 = vpop.f32.mrf.mxu0
  %1343 = vmatprep.mubr.f32.mxu0 0.0
  %1344 = vmatmul.mubr.f32.gmra.mxu0 %v1160
  %v1345 = vpop.f32.mrf.mxu0
  %v1346 = vadd.f32 %v1237, %v1345
  %v1347 = vpop.f32.mrf.mxu0
  %1348 = vmatprep.mubr.f32.mxu0 0.0
  %1349 = vmatmul.mubr.f32.gmra.mxu0 %v1161
  %v1350 = vpop.f32.mrf.mxu0
  %v1351 = vadd.f32 %v1237, %v1350
  %v1352 = vpop.f32.mrf.mxu0
  %1353 = vmatprep.mubr.f32.mxu0 0.0
  %1354 = vmatmul.mubr.f32.gmra.mxu0 %v1162
  %v1355 = vpop.f32.mrf.mxu0
  %v1356 = vadd.f32 %v1237, %v1355
  %v1357 = vpop.f32.mrf.mxu0
  %1358 = vmatprep.mubr.f32.mxu0 0.0
  %1359 = vmatmul.mubr.f32.gmra.mxu0 %v1163
  %v1360 = vpop.f32.mrf.mxu0
  %v1361 = vadd.f32 %v1237, %v1360
  %v1362 = vpop.f32.mrf.mxu0
  %1363 = vmatprep.mubr.f32.mxu0 0.0
  %1364 = vmatmul.mubr.f32.gmra.mxu0 %v1164
  %v1365 = vpop.f32.mrf.mxu0
  %v1366 = vadd.f32 %v1237, %v1365
  %v1367 = vpop.f32.mrf.mxu0
  %1368 = vmatprep.mubr.f32.mxu0 0.0
  %1369 = vmatmul.mubr.f32.gmra.mxu0 %v1165
  %v1370 = vpop.f32.mrf.mxu0
  %v1371 = vadd.f32 %v1237, %v1370
  %v1372 = vpop.f32.mrf.mxu0
  %1373 = vmatprep.mubr.f32.mxu0 0.0
  %1374 = vmatmul.mubr.f32.gmra.mxu0 %v1166
  %v1375 = vpop.f32.mrf.mxu0
  %v1376 = vadd.f32 %v1237, %v1375
  %v1377 = vpop.f32.mrf.mxu0
  %1378 = vmatprep.mubr.f32.mxu0 0.0
  %1379 = vmatmul.mubr.f32.gmra.mxu0 %v1167
  %v1380 = vpop.f32.mrf.mxu0
  %v1381 = vadd.f32 %v1237, %v1380
  %v1382 = vpop.f32.mrf.mxu0
  %1383 = vmatprep.mubr.f32.mxu0 0.0
  %1384 = vmatmul.mubr.f32.gmra.mxu0 %v1168
  %v1385 = vpop.f32.mrf.mxu0
  %v1386 = vadd.f32 %v1237, %v1385
  %v1387 = vpop.f32.mrf.mxu0
  %1388 = vmatprep.mubr.f32.mxu0 0.0
  %1389 = vmatmul.mubr.f32.gmra.mxu0 %v1169
  %v1390 = vpop.f32.mrf.mxu0
  %v1391 = vadd.f32 %v1237, %v1390
  %v1392 = vpop.f32.mrf.mxu0
  %1393 = vmatprep.mubr.f32.mxu0 0.0
  %1394 = vmatmul.mubr.f32.gmra.mxu0 %v1170
  %v1395 = vpop.f32.mrf.mxu0
  %v1396 = vadd.f32 %v1237, %v1395
  %v1397 = vpop.f32.mrf.mxu0
  %1398 = vmatprep.mubr.f32.mxu0 0.0
  %1399 = vmatmul.mubr.f32.gmra.mxu0 %v1171
  %v1400 = vpop.f32.mrf.mxu0
  %v1401 = vadd.f32 %v1237, %v1400
  %v1402 = vpop.f32.mrf.mxu0
  %1403 = vmatprep.mubr.f32.mxu0 0.0
  %1404 = vmatmul.mubr.f32.gmra.mxu0 %v1172
  %v1405 = vpop.f32.mrf.mxu0
  %v1406 = vadd.f32 %v1237, %v1405
  %v1407 = vpop.f32.mrf.mxu0
  %1408 = vmatprep.mubr.f32.mxu0 0.0
  %1409 = vmatmul.mubr.f32.gmra.mxu0 %v1173
  %v1410 = vpop.f32.mrf.mxu0
  %v1411 = vadd.f32 %v1237, %v1410
  %v1412 = vpop.f32.mrf.mxu0
  %1413 = vmatprep.mubr.f32.mxu0 0.0
  %1414 = vmatmul.mubr.f32.gmra.mxu0 %v1174
  %v1415 = vpop.f32.mrf.mxu0
  %v1416 = vadd.f32 %v1237, %v1415
  %v1417 = vpop.f32.mrf.mxu0
  %1418 = vmatprep.mubr.f32.mxu0 0.0
  %1419 = vmatmul.mubr.f32.gmra.mxu0 %v1175
  %v1420 = vpop.f32.mrf.mxu0
  %v1421 = vadd.f32 %v1237, %v1420
  %v1422 = vpop.f32.mrf.mxu0
  %1423 = vmatprep.mubr.f32.mxu0 0.0
  %1424 = vmatmul.mubr.f32.gmra.mxu0 %v1176
  %v1425 = vpop.f32.mrf.mxu0
  %v1426 = vadd.f32 %v1237, %v1425
  %v1427 = vpop.f32.mrf.mxu0
  %1428 = vmatprep.mubr.f32.mxu0 0.0
  %1429 = vmatmul.mubr.f32.gmra.mxu0 %v1177
  %v1430 = vpop.f32.mrf.mxu0
  %v1431 = vadd.f32 %v1237, %v1430
  %v1432 = vpop.f32.mrf.mxu0
  %1433 = vmatprep.mubr.f32.mxu0 0.0
  %1434 = vmatmul.mubr.f32.gmra.mxu0 %v1178
  %v1435 = vpop.f32.mrf.mxu0
  %v1436 = vadd.f32 %v1237, %v1435
  %v1437 = vpop.f32.mrf.mxu0
  %1438 = vmatprep.mubr.f32.mxu0 0.0
  %1439 = vmatmul.mubr.f32.gmra.mxu0 %v1179
  %v1440 = vpop.f32.mrf.mxu0
  %v1441 = vadd.f32 %v1237, %v1440
  %v1442 = vpop.f32.mrf.mxu0
  %1443 = vmatprep.mubr.f32.mxu0 0.0
  %1444 = vmatmul.mubr.f32.gmra.mxu0 %v1180
  %v1445 = vpop.f32.mrf.mxu0
  %v1446 = vadd.f32 %v1237, %v1445
  %v1447 = vpop.f32.mrf.mxu0
  %1448 = vmatprep.mubr.f32.mxu0 0.0
  %1449 = vmatmul.mubr.f32.gmra.mxu0 %v1181
  %v1450 = vpop.f32.mrf.mxu0
  %v1451 = vadd.f32 %v1237, %v1450
  %v1452 = vpop.f32.mrf.mxu0
  %1453 = vmatprep.mubr.f32.mxu0 0.0
  %1454 = vmatmul.mubr.f32.gmra.mxu0 %v1182
  %v1455 = vpop.f32.mrf.mxu0
  %v1456 = vadd.f32 %v1237, %v1455
  %v1457 = vpop.f32.mrf.mxu0
  %1458 = vmatprep.mubr.f32.mxu0 0.0
  %1459 = vmatmul.mubr.f32.gmra.mxu0 %v1183
  %v1460 = vpop.f32.mrf.mxu0
  %v1461 = vadd.f32 %v1237, %v1460
  %v1462 = vpop.f32.mrf.mxu0
  %1463 = vmatprep.mubr.f32.mxu0 0.0
  %1464 = vmatmul.mubr.f32.gmra.mxu0 %v1184
  %v1465 = vpop.f32.mrf.mxu0
  %v1466 = vadd.f32 %v1237, %v1465
  %v1467 = vpop.f32.mrf.mxu0
  %1468 = vmatprep.mubr.f32.mxu0 0.0
  %1469 = vmatmul.mubr.f32.gmra.mxu0 %v1185
  %v1470 = vpop.f32.mrf.mxu0
  %v1471 = vadd.f32 %v1237, %v1470
  %v1472 = vpop.f32.mrf.mxu0
  %1473 = vmatprep.mubr.f32.mxu0 0.0
  %1474 = vmatmul.mubr.f32.gmra.mxu0 %v1186
  %v1475 = vpop.f32.mrf.mxu0
  %v1476 = vadd.f32 %v1237, %v1475
  %v1477 = vpop.f32.mrf.mxu0
  %1478 = vmatprep.mubr.f32.mxu0 0.0
  %1479 = vmatmul.mubr.f32.gmra.mxu0 %v1187
  %v1480 = vpop.f32.mrf.mxu0
  %v1481 = vadd.f32 %v1237, %v1480
  %v1482 = vpop.f32.mrf.mxu0
  %1483 = vmatprep.mubr.f32.mxu0 0.0
  %1484 = vmatmul.mubr.f32.gmra.mxu0 %v1188
  %v1485 = vpop.f32.mrf.mxu0
  %v1486 = vadd.f32 %v1237, %v1485
  %v1487 = vpop.f32.mrf.mxu0
  %1488 = vmatprep.mubr.f32.mxu0 0.0
  %1489 = vmatmul.mubr.f32.gmra.mxu0 %v1189
  %v1490 = vpop.f32.mrf.mxu0
  %v1491 = vadd.f32 %v1237, %v1490
  %v1492 = vpop.f32.mrf.mxu0
  %1493 = vmatprep.mubr.f32.mxu0 0.0
  %1494 = vmatmul.mubr.f32.gmra.mxu0 %v1190
  %v1495 = vpop.f32.mrf.mxu0
  %v1496 = vadd.f32 %v1237, %v1495
  %v1497 = vpop.f32.mrf.mxu0
  %1498 = vmatprep.mubr.f32.mxu0 0.0
  %1499 = vmatmul.mubr.f32.gmra.mxu0 %v1191
  %v1500 = vpop.f32.mrf.mxu0
  %v1501 = vadd.f32 %v1237, %v1500
  %v1502 = vpop.f32.mrf.mxu0
  %1503 = vmatprep.mubr.f32.mxu0 0.0
  %1504 = vmatmul.mubr.f32.gmra.mxu0 %v1192
  %v1505 = vpop.f32.mrf.mxu0
  %v1506 = vadd.f32 %v1237, %v1505
  %v1507 = vpop.f32.mrf.mxu0
  %1508 = vmatprep.mubr.f32.mxu0 0.0
  %1509 = vmatmul.mubr.f32.gmra.mxu0 %v1193
  %v1510 = vpop.f32.mrf.mxu0
  %v1511 = vadd.f32 %v1237, %v1510
  %v1512 = vpop.f32.mrf.mxu0
  %1513 = vmatprep.mubr.f32.mxu0 0.0
  %1514 = vmatmul.mubr.f32.gmra.mxu0 %v1194
  %v1515 = vpop.f32.mrf.mxu0
  %v1516 = vadd.f32 %v1237, %v1515
  %v1517 = vpop.f32.mrf.mxu0
  %1518 = vmatprep.mubr.f32.mxu0 0.0
  %1519 = vmatmul.mubr.f32.gmra.mxu0 %v1195
  %v1520 = vpop.f32.mrf.mxu0
  %v1521 = vadd.f32 %v1237, %v1520
  %v1522 = vpop.f32.mrf.mxu0
  %1523 = vmatprep.mubr.f32.mxu0 0.0
  %1524 = vmatmul.mubr.f32.gmra.mxu0 %v1196
  %v1525 = vpop.f32.mrf.mxu0
  %v1526 = vadd.f32 %v1237, %v1525
  %v1527 = vpop.f32.mrf.mxu0
  %1528 = vmatprep.mubr.f32.mxu0 0.0
  %1529 = vmatmul.mubr.f32.gmra.mxu0 %v1197
  %v1530 = vpop.f32.mrf.mxu0
  %v1531 = vadd.f32 %v1237, %v1530
  %v1532 = vpop.f32.mrf.mxu0
  %1533 = vmatprep.mubr.f32.mxu0 0.0
  %1534 = vmatmul.mubr.f32.gmra.mxu0 %v1198
  %v1535 = vpop.f32.mrf.mxu0
  %v1536 = vadd.f32 %v1237, %v1535
  %v1537 = vpop.f32.mrf.mxu0
  %1538 = vmatprep.mubr.f32.mxu0 0.0
  %1539 = vmatmul.mubr.f32.gmra.mxu0 %v1199
  %v1540 = vpop.f32.mrf.mxu0
  %v1541 = vadd.f32 %v1237, %v1540
  %v1542 = vpop.f32.mrf.mxu0
  %1543 = vmatprep.mubr.f32.mxu0 0.0
  %1544 = vmatmul.mubr.f32.gmra.mxu0 %v1200
  %v1545 = vpop.f32.mrf.mxu0
  %v1546 = vadd.f32 %v1237, %v1545
  %v1547 = vpop.f32.mrf.mxu0
  %1548 = vmatprep.mubr.f32.mxu0 0.0
  %1549 = vmatmul.mubr.f32.gmra.mxu0 %v1201
  %v1550 = vpop.f32.mrf.mxu0
  %v1551 = vadd.f32 %v1237, %v1550
  %v1552 = vpop.f32.mrf.mxu0
  %1553 = vmatprep.mubr.f32.mxu0 0.0
  %1554 = vmatmul.mubr.f32.gmra.mxu0 %v1202
  %v1555 = vpop.f32.mrf.mxu0
  %v1556 = vadd.f32 %v1237, %v1555
  %v1557 = vpop.f32.mrf.mxu0
  %1558 = vmatprep.mubr.f32.mxu0 0.0
  %1559 = vmatmul.mubr.f32.gmra.mxu0 %v1203
  %v1560 = vpop.f32.mrf.mxu0
  %v1561 = vadd.f32 %v1237, %v1560
  %v1562 = vpop.f32.mrf.mxu0
  %1563 = vmatprep.mubr.f32.mxu0 0.0
  %1564 = vmatmul.mubr.f32.gmra.mxu0 %v1204
  %v1565 = vpop.f32.mrf.mxu0
  %v1566 = vadd.f32 %v1237, %v1565
  %v1567 = vpop.f32.mrf.mxu0
  %1568 = vmatprep.mubr.f32.mxu0 0.0
  %1569 = vmatmul.mubr.f32.gmra.mxu0 %v1205
  %v1570 = vpop.f32.mrf.mxu0
  %v1571 = vadd.f32 %v1237, %v1570
  %v1572 = vpop.f32.mrf.mxu0
  %1573 = vmatprep.mubr.f32.mxu0 0.0
  %1574 = vmatmul.mubr.f32.gmra.mxu0 %v1206
  %v1575 = vpop.f32.mrf.mxu0
  %v1576 = vadd.f32 %v1237, %v1575
  %v1577 = vpop.f32.mrf.mxu0
  %1578 = vmatprep.mubr.f32.mxu0 0.0
  %1579 = vmatmul.mubr.f32.gmra.mxu0 %v1207
  %v1580 = vpop.f32.mrf.mxu0
  %v1581 = vadd.f32 %v1237, %v1580
  %v1582 = vpop.f32.mrf.mxu0
  %1583 = vmatprep.mubr.f32.mxu0 0.0
  %1584 = vmatmul.mubr.f32.gmra.mxu0 %v1208
  %v1585 = vpop.f32.mrf.mxu0
  %v1586 = vadd.f32 %v1237, %v1585
  %v1587 = vpop.f32.mrf.mxu0
  %1588 = vmatprep.mubr.f32.mxu0 0.0
  %1589 = vmatmul.mubr.f32.gmra.mxu0 %v1209
  %v1590 = vpop.f32.mrf.mxu0
  %v1591 = vadd.f32 %v1237, %v1590
  %v1592 = vpop.f32.mrf.mxu0
  %1593 = vmatprep.mubr.f32.mxu0 0.0
  %1594 = vmatmul.mubr.f32.gmra.mxu0 %v1210
  %v1595 = vpop.f32.mrf.mxu0
  %v1596 = vadd.f32 %v1237, %v1595
  %v1597 = vpop.f32.mrf.mxu0
  %1598 = vmatprep.mubr.f32.mxu0 0.0
  %1599 = vmatmul.mubr.f32.gmra.mxu0 %v1211
  %v1600 = vpop.f32.mrf.mxu0
  %v1601 = vadd.f32 %v1237, %v1600
  %v1602 = vpop.f32.mrf.mxu0
  %1603 = vmatprep.mubr.f32.mxu0 0.0
  %1604 = vmatmul.mubr.f32.gmra.mxu0 %v1212
  %v1605 = vpop.f32.mrf.mxu0
  %v1606 = vadd.f32 %v1237, %v1605
  %v1607 = vpop.f32.mrf.mxu0
  %1608 = vmatprep.mubr.f32.mxu0 0.0
  %1609 = vmatmul.mubr.f32.gmra.mxu0 %v1213
  %v1610 = vpop.f32.mrf.mxu0
  %v1611 = vadd.f32 %v1237, %v1610
  %v1612 = vpop.f32.mrf.mxu0
  %1613 = vmatprep.mubr.f32.mxu0 0.0
  %1614 = vmatmul.mubr.f32.gmra.mxu0 %v1214
  %v1615 = vpop.f32.mrf.mxu0
  %v1616 = vadd.f32 %v1237, %v1615
  %v1617 = vpop.f32.mrf.mxu0
  %1618 = vmatprep.mubr.f32.mxu0 0.0
  %1619 = vmatmul.mubr.f32.gmra.mxu0 %v1215
  %v1620 = vpop.f32.mrf.mxu0
  %v1621 = vadd.f32 %v1237, %v1620
  %v1622 = vpop.f32.mrf.mxu0
  %1623 = vdwg.mxu0
  %1624 = vst [vmem:[%s7] sm:$0xff] %v1306
  %1625 = vst [vmem:[%s7 + $0x8] sm:$0xff] %v1311
  %1626 = vst [vmem:[%s7 + $0x10] sm:$0xff] %v1316
  %1627 = vst [vmem:[%s7 + $0x18] sm:$0xff] %v1321
  %1628 = vst [vmem:[%s7 + $0x20] sm:$0xff] %v1326
  %1629 = vst [vmem:[%s7 + $0x28] sm:$0xff] %v1331
  %1630 = vst [vmem:[%s7 + $0x30] sm:$0xff] %v1336
  %1631 = vst [vmem:[%s7 + $0x38] sm:$0xff] %v1341
  %1632 = vst [vmem:[%s7 + $0x40] sm:$0xff] %v1346
  %1633 = vst [vmem:[%s7 + $0x48] sm:$0xff] %v1351
  %1634 = vst [vmem:[%s7 + $0x50] sm:$0xff] %v1356
  %1635 = vst [vmem:[%s7 + $0x58] sm:$0xff] %v1361
  %1636 = vst [vmem:[%s7 + $0x60] sm:$0xff] %v1366
  %1637 = vst [vmem:[%s7 + $0x68] sm:$0xff] %v1371
  %1638 = vst [vmem:[%s7 + $0x70] sm:$0xff] %v1376
  %1639 = vst [vmem:[%s7 + $0x78] sm:$0xff] %v1381
  %1640 = vst [vmem:[%s7 + $0x80] sm:$0xff] %v1386
  %1641 = vst [vmem:[%s7 + $0x88] sm:$0xff] %v1391
  %1642 = vst [vmem:[%s7 + $0x90] sm:$0xff] %v1396
  %1643 = vst [vmem:[%s7 + $0x98] sm:$0xff] %v1401
  %1644 = vst [vmem:[%s7 + $0xa0] sm:$0xff] %v1406
  %1645 = vst [vmem:[%s7 + $0xa8] sm:$0xff] %v1411
  %1646 = vst [vmem:[%s7 + $0xb0] sm:$0xff] %v1416
  %1647 = vst [vmem:[%s7 + $0xb8] sm:$0xff] %v1421
  %1648 = vst [vmem:[%s7 + $0xc0] sm:$0xff] %v1426
  %1649 = vst [vmem:[%s7 + $0xc8] sm:$0xff] %v1431
  %1650 = vst [vmem:[%s7 + $0xd0] sm:$0xff] %v1436
  %1651 = vst [vmem:[%s7 + $0xd8] sm:$0xff] %v1441
  %1652 = vst [vmem:[%s7 + $0xe0] sm:$0xff] %v1446
  %1653 = vst [vmem:[%s7 + $0xe8] sm:$0xff] %v1451
  %1654 = vst [vmem:[%s7 + $0xf0] sm:$0xff] %v1456
  %1655 = vst [vmem:[%s7 + $0xf8] sm:$0xff] %v1461
  %1656 = vst [vmem:[%s7 + $0x100] sm:$0xff] %v1466
  %1657 = vst [vmem:[%s7 + $0x108] sm:$0xff] %v1471
  %1658 = vst [vmem:[%s7 + $0x110] sm:$0xff] %v1476
  %1659 = vst [vmem:[%s7 + $0x118] sm:$0xff] %v1481
  %1660 = vst [vmem:[%s7 + $0x120] sm:$0xff] %v1486
  %1661 = vst [vmem:[%s7 + $0x128] sm:$0xff] %v1491
  %1662 = vst [vmem:[%s7 + $0x130] sm:$0xff] %v1496
  %1663 = vst [vmem:[%s7 + $0x138] sm:$0xff] %v1501
  %1664 = vst [vmem:[%s7 + $0x140] sm:$0xff] %v1506
  %1665 = vst [vmem:[%s7 + $0x148] sm:$0xff] %v1511
  %1666 = vst [vmem:[%s7 + $0x150] sm:$0xff] %v1516
  %1667 = vst [vmem:[%s7 + $0x158] sm:$0xff] %v1521
  %1668 = vst [vmem:[%s7 + $0x160] sm:$0xff] %v1526
  %1669 = vst [vmem:[%s7 + $0x168] sm:$0xff] %v1531
  %1670 = vst [vmem:[%s7 + $0x170] sm:$0xff] %v1536
  %1671 = vst [vmem:[%s7 + $0x178] sm:$0xff] %v1541
  %1672 = vst [vmem:[%s7 + $0x180] sm:$0xff] %v1546
  %1673 = vst [vmem:[%s7 + $0x188] sm:$0xff] %v1551
  %1674 = vst [vmem:[%s7 + $0x190] sm:$0xff] %v1556
  %1675 = vst [vmem:[%s7 + $0x198] sm:$0xff] %v1561
  %1676 = vst [vmem:[%s7 + $0x1a0] sm:$0xff] %v1566
  %1677 = vst [vmem:[%s7 + $0x1a8] sm:$0xff] %v1571
  %1678 = vst [vmem:[%s7 + $0x1b0] sm:$0xff] %v1576
  %1679 = vst [vmem:[%s7 + $0x1b8] sm:$0xff] %v1581
  %1680 = vst [vmem:[%s7 + $0x1c0] sm:$0xff] %v1586
  %1681 = vst [vmem:[%s7 + $0x1c8] sm:$0xff] %v1591
  %1682 = vst [vmem:[%s7 + $0x1d0] sm:$0xff] %v1596
  %1683 = vst [vmem:[%s7 + $0x1d8] sm:$0xff] %v1601
  %1684 = vst [vmem:[%s7 + $0x1e0] sm:$0xff] %v1606
  %1685 = vst [vmem:[%s7 + $0x1e8] sm:$0xff] %v1611
  %1686 = vst [vmem:[%s7 + $0x1f0] sm:$0xff] %v1616
  %1687 = vst [vmem:[%s7 + $0x1f8] sm:$0xff] %v1621
  // Predicated region
  $region30: #{net_forward.1} parent=0 // pred_check
    _
  $region31: #{net_forward.1} parent=0 // pred_check_branch
    %1689 = sbr.rel (0) target = $region33
  $region32: #{net_forward.1} parent=0 // pred_region
    _
  $region33: #{net_forward.1} parent=0 // pred_fallthru
    _
  // Predicated region
  $region34: #{net_forward.1} parent=0 // pred_check
    _
  $region35: #{net_forward.1} parent=0 // pred_check_branch
    %1691 = sbr.rel (0) target = $region37
  $region36: #{net_forward.1} parent=0 // pred_region
    _
  $region37: #{net_forward.1} parent=0 // pred_fallthru
    _

</llo_original>
